<compile_context>
chip_gen: v5e
topology: v5e:2x2
jax: 0.10.0
libtpu: 0.0.40
codegen_flags: <defaults>
</compile_context>

<pallas_src>
import functools

import jax
import jax.numpy as jnp
from jax.experimental import pallas as pl
from jax.experimental.pallas import tpu as pltpu


def _round_up(x, m):
    return (x + m - 1) // m * m


def _vq_kernel(x_ref, w_ref, wsq_ref, q_ref, counts_ref, sse_ref, *,
               n_valid_rows, tile_rows, dist_dtype):
    """One tile of rows.

    x_ref:      (TN, Dp)   flattened (padded) input rows
    w_ref:      (Kp, Dp)   padded codebook (single copy)
    wsq_ref:    (1, Kp)    precomputed ||e_k||^2 (+huge for padded codes)
    q_ref:      (TN, Dp)   quantized output tile
    counts_ref: (1, Kp)    per-tile one-hot counts (partial, reduced outside)
    sse_ref:    (1, 128)   per-tile sum of squared errors (broadcast in lanes)
    """
    i = pl.program_id(0)

    x = x_ref[...].astype(jnp.float32)            # (TN, Dp)
    w = w_ref[...].astype(jnp.float32)            # (Kp, Dp)
    w_sq = wsq_ref[...]                           # (1, Kp)

    # Distance surrogate: ||e||^2 - 2 x·e  (||x||^2 dropped — per-row constant,
    # does not change the argmin). Single codebook copy: contract on D.
    xd = x.astype(dist_dtype)
    wd = w.astype(dist_dtype)
    dots = jax.lax.dot_general(
        xd, wd, dimension_numbers=(((1,), (1,)), ((), ())),
        preferred_element_type=jnp.float32)       # (TN, Kp)
    dist = w_sq - 2.0 * dots                      # (TN, Kp)

    # argmin over codes with first-occurrence tie-break (matches torch.argmin)
    Kp = dist.shape[1]
    min_d = jnp.min(dist, axis=1, keepdims=True)              # (TN, 1)
    iota = jax.lax.broadcasted_iota(jnp.int32, dist.shape, 1)  # (TN, Kp)
    masked_iota = jnp.where(dist == min_d, iota, Kp)
    idx = jnp.min(masked_iota, axis=1, keepdims=True)          # (TN, 1)

    # one-hot encodings and codebook gather via MXU matmul
    onehot = (iota == idx).astype(jnp.float32)                 # (TN, Kp)
    q = jnp.dot(onehot, w, preferred_element_type=jnp.float32)  # (TN, Dp)
    q_ref[...] = q.astype(q_ref.dtype)

    # Per-tile statistics (mask out padded rows in the last tile — the check
    # is static, so no extra work is emitted when N divides evenly).
    diff = q - x
    if n_valid_rows % tile_rows != 0:
        row = jax.lax.broadcasted_iota(jnp.int32, (onehot.shape[0], 1), 0)
        valid = ((i * tile_rows + row) < n_valid_rows).astype(jnp.float32)
        onehot = onehot * valid
        diff = diff * valid

    counts_ref[...] = jnp.sum(onehot, axis=0, keepdims=True)           # (1, Kp)
    sse_ref[...] = jnp.broadcast_to(
        jnp.sum(diff * diff).reshape(1, 1), sse_ref.shape)              # (1, 128)


def vector_quantizer_forward(inputs, embedding_weight, commitment_cost,
                             tile_rows=256,
                             distance_matmul_dtype=jnp.float32):
    """Pallas implementation of VectorQuantizer.forward.

    inputs:           (..., D) float
    embedding_weight: (K, D)   codebook
    distance_matmul_dtype: set to jnp.bfloat16 on v6e/v7x for ~2x MXU rate
        on the distance matmul (one-hot gather / sse stay f32); keep f32 for
        bit-exact comparison with the reference.
    Returns (quantized, loss, perplexity) matching the torch forward values.
    """
    input_shape = inputs.shape
    K, D = embedding_weight.shape
    flat = inputs.reshape(-1, D)
    N = flat.shape[0]

    # Lane-dense padding: K, D -> multiples of 128; N -> multiple of tile_rows.
    D_pad = _round_up(D, 128)
    K_pad = _round_up(K, 128)
    N_pad = _round_up(N, tile_rows)
    num_tiles = N_pad // tile_rows

    w = embedding_weight.astype(jnp.float32)
    w_sq = jnp.sum(w * w, axis=1)                                  # (K,)
    # Padded codes: zero rows + huge squared norm -> never selected by argmin.
    w_p = jnp.zeros((K_pad, D_pad), jnp.float32).at[:K, :D].set(w)
    w_sq_p = jnp.full((1, K_pad), 1e30, jnp.float32).at[0, :K].set(w_sq)

    x_p = jnp.zeros((N_pad, D_pad), jnp.float32).at[:N, :D].set(
        flat.astype(jnp.float32))

    kernel = functools.partial(
        _vq_kernel, n_valid_rows=N, tile_rows=tile_rows,
        dist_dtype=distance_matmul_dtype)

    q_flat, counts_parts, sse_parts = pl.pallas_call(
        kernel,
        out_shape=(
            jax.ShapeDtypeStruct((N_pad, D_pad), inputs.dtype),
            jax.ShapeDtypeStruct((num_tiles, K_pad), jnp.float32),
            jax.ShapeDtypeStruct((num_tiles, 128), jnp.float32),
        ),
        grid_spec=pltpu.PrefetchScalarGridSpec(
            num_scalar_prefetch=0,
            grid=(num_tiles,),
            in_specs=[
                pl.BlockSpec((tile_rows, D_pad), lambda i: (i, 0)),  # x tile
                pl.BlockSpec((K_pad, D_pad), lambda i: (0, 0)),      # codebook
                pl.BlockSpec((1, K_pad), lambda i: (0, 0)),          # ||e||^2
            ],
            out_specs=[
                pl.BlockSpec((tile_rows, D_pad), lambda i: (i, 0)),  # quantized
                pl.BlockSpec((1, K_pad), lambda i: (i, 0)),          # counts部分
                pl.BlockSpec((1, 128), lambda i: (i, 0)),            # sse部分
            ],
        ),
        compiler_params=pltpu.CompilerParams(
            # No cross-iteration accumulators -> row axis is truly parallel
            # (sharded across both TensorCores on v7x).
            dimension_semantics=("parallel",),
        ),
    )(x_p, w_p, w_sq_p)

    # Tiny JAX epilogue: reduce per-tile partials and compute scalars.
    counts = jnp.sum(counts_parts, axis=0)[:K]                     # (K,)
    sse = jnp.sum(sse_parts[:, 0])
    mse = sse / jnp.float32(N * D)
    # q_latent_loss == e_latent_loss in forward value
    loss = (1.0 + commitment_cost) * mse
    avg_probs = counts / jnp.float32(N)
    perplexity = jnp.exp(-jnp.sum(avg_probs * jnp.log(avg_probs + 1e-10)))

    # Straight-through: forward value of inputs + (q - inputs).detach() == q
    # TODO(synk): gradient-side straight-through / stop_gradient semantics are
    # a training-time autodiff concern, not part of this forward kernel.
    quantized = q_flat[:N, :D].reshape(input_shape).astype(inputs.dtype)
    return quantized, loss, perplexity


def _reference_forward(inputs, weight, commitment_cost):
    """Pure-JAX reference mirroring the torch code, for a sanity check."""
    D = weight.shape[1]
    flat = inputs.reshape(-1, D)
    dist = (jnp.sum(flat**2, axis=1, keepdims=True)
            + jnp.sum(weight**2, axis=1)
            - 2.0 * flat @ weight.T)
    idx = jnp.argmin(dist, axis=1)
    enc = jax.nn.one_hot(idx, weight.shape[0], dtype=jnp.float32)
    q = (enc @ weight).reshape(inputs.shape)
    mse = jnp.mean((q - inputs) ** 2)
    loss = mse + commitment_cost * mse
    avg = jnp.mean(enc, axis=0)
    perp = jnp.exp(-jnp.sum(avg * jnp.log(avg + 1e-10)))
    return q, loss, perp


if __name__ == "__main__":
    key = jax.random.PRNGKey(0)
    k_x, k_w = jax.random.split(key)

    num_embeddings = 64
    embedding_dim = 32
    commitment_cost = 0.25

    # Small inputs: (batch=2, seq=8, embedding_dim=32) -> N = 16 rows
    # (exercises the row-mask path since 16 < tile_rows).
    x = jax.random.normal(k_x, (2, 8, embedding_dim), dtype=jnp.float32)

    # nn.Embedding weight init: uniform(-1/K, 1/K), shape (K, D)
    embedding_weight = jax.random.uniform(
        k_w, (num_embeddings, embedding_dim), dtype=jnp.float32,
        minval=-1.0 / num_embeddings, maxval=1.0 / num_embeddings)

    quantized, loss, perplexity = vector_quantizer_forward(
        x, embedding_weight, commitment_cost, tile_rows=256)
    jax.block_until_ready((quantized, loss, perplexity))

    # correctness check against pure-JAX reference (f32 distance matmul)
    q_ref, loss_ref, perp_ref = _reference_forward(
        x, embedding_weight, commitment_cost)
    assert quantized.shape == x.shape
    assert jnp.allclose(quantized, q_ref, atol=1e-5), "quantized mismatch"
    assert jnp.allclose(loss, loss_ref, atol=1e-6), "loss mismatch"
    assert jnp.allclose(perplexity, perp_ref, atol=1e-4), "perplexity mismatch"

    print("KERNEL_OK")
</pallas_src>

<mosaic_0001>
module attributes {stable_mosaic.version = 11 : i64} {
  func.func @_vq_kernel(%arg0: i32, %arg1: memref<256x128xf32, #tpu.memory_space<vmem>>, %arg2: memref<128x128xf32, #tpu.memory_space<vmem>>, %arg3: memref<1x128xf32, #tpu.memory_space<vmem>>, %arg4: memref<256x128xf32, #tpu.memory_space<vmem>>, %arg5: memref<1x128xf32, #tpu.memory_space<vmem>>, %arg6: memref<1x128xf32, #tpu.memory_space<vmem>>) attributes {dimension_semantics = [#tpu.dimension_semantics<parallel>], iteration_bounds = array<i64: 1>, scalar_prefetch = 0 : i64, scratch_operands = 0 : i64, tpu.core_type = #tpu.core_type<tc>, window_params = [{transform_indices = @transform_0, window_bounds = array<i64: 256, 128>}, {pipeline_mode = #tpu.pipeline_mode<synchronous>, transform_indices = @transform_1, window_bounds = array<i64: 128, 128>}, {pipeline_mode = #tpu.pipeline_mode<synchronous>, transform_indices = @transform_2, window_bounds = array<i64: 1, 128>}, {transform_indices = @transform_3, window_bounds = array<i64: 256, 128>}, {transform_indices = @transform_4, window_bounds = array<i64: 1, 128>}, {transform_indices = @transform_5, window_bounds = array<i64: 1, 128>}]} {
    %c0 = arith.constant 0 : index
    %c0_0 = arith.constant 0 : index
    %0 = vector.load %arg1[%c0, %c0_0] : memref<256x128xf32, #tpu.memory_space<vmem>>, vector<256x128xf32>
    %c0_1 = arith.constant 0 : index
    %c0_2 = arith.constant 0 : index
    %1 = vector.load %arg2[%c0_1, %c0_2] : memref<128x128xf32, #tpu.memory_space<vmem>>, vector<128x128xf32>
    %c0_3 = arith.constant 0 : index
    %c0_4 = arith.constant 0 : index
    %2 = vector.load %arg3[%c0_3, %c0_4] : memref<1x128xf32, #tpu.memory_space<vmem>>, vector<1x128xf32>
    %cst = arith.constant dense<0.000000e+00> : vector<256x128xf32>
    %3 = tpu.matmul %0, %1, %cst {dimension_numbers = #tpu.dot_dimension_numbers<[1], [1], [0], [0], [0, 0, 1, 0], [], []>} : vector<256x128xf32>, vector<128x128xf32>, vector<256x128xf32> -> vector<256x128xf32>
    %cst_5 = arith.constant 2.000000e+00 : f32
    %4 = vector.broadcast %cst_5 : f32 to vector<256x128xf32>
    %5 = arith.mulf %4, %3 : vector<256x128xf32>
    %6 = vector.broadcast %2 : vector<1x128xf32> to vector<256x128xf32>
    %7 = arith.subf %6, %5 : vector<256x128xf32>
    %cst_6 = arith.constant dense<0x7F800000> : vector<256xf32>
    %8 = vector.multi_reduction <minimumf>, %7, %cst_6 [1] : vector<256x128xf32> to vector<256xf32>
    %9 = vector.shape_cast %8 : vector<256xf32> to vector<256x1xf32>
    %10 = tpu.iota {dimensions = array<i32: 1>} : vector<256x128xi32>
    %11 = vector.broadcast %9 : vector<256x1xf32> to vector<256x128xf32>
    %12 = arith.cmpf oeq, %7, %11 : vector<256x128xf32>
    %c128_i32 = arith.constant 128 : i32
    %13 = vector.broadcast %c128_i32 : i32 to vector<256x128xi32>
    %14 = arith.select %12, %10, %13 : vector<256x128xi1>, vector<256x128xi32>
    %cst_7 = arith.constant dense<2147483647> : vector<256xi32>
    %15 = vector.multi_reduction <minsi>, %14, %cst_7 [1] : vector<256x128xi32> to vector<256xi32>
    %16 = vector.shape_cast %15 : vector<256xi32> to vector<256x1xi32>
    %17 = vector.broadcast %16 : vector<256x1xi32> to vector<256x128xi32>
    %18 = arith.cmpi eq, %10, %17 : vector<256x128xi32>
    %19 = arith.extui %18 : vector<256x128xi1> to vector<256x128xi32>
    %20 = arith.sitofp %19 : vector<256x128xi32> to vector<256x128xf32>
    %cst_8 = arith.constant dense<0.000000e+00> : vector<256x128xf32>
    %21 = tpu.matmul %20, %1, %cst_8 {dimension_numbers = #tpu.dot_dimension_numbers<[1], [0], [0], [1], [0, 0, 1, 1], [], []>} : vector<256x128xf32>, vector<128x128xf32>, vector<256x128xf32> -> vector<256x128xf32>
    %c0_9 = arith.constant 0 : index
    %c0_10 = arith.constant 0 : index
    %22 = vector.load %arg4[%c0_9, %c0_10] : memref<256x128xf32, #tpu.memory_space<vmem>>, vector<256x128xf32>
    tpu.vector_store %arg4[%c0_9, %c0_10], %21 {strides = array<i32>} : memref<256x128xf32, #tpu.memory_space<vmem>>, vector<256x128xf32>,
    %23 = arith.subf %21, %0 : vector<256x128xf32>
    %24 = tpu.iota {dimensions = array<i32: 0>} : vector<256x1xi32>
    %c256_i32 = arith.constant 256 : i32
    %25 = arith.muli %arg0, %c256_i32 : i32
    %26 = vector.broadcast %25 : i32 to vector<256x1xi32>
    %27 = arith.addi %26, %24 : vector<256x1xi32>
    %c16_i32 = arith.constant 16 : i32
    %28 = vector.broadcast %c16_i32 : i32 to vector<256x1xi32>
    %29 = arith.cmpi slt, %27, %28 : vector<256x1xi32>
    %30 = arith.extui %29 : vector<256x1xi1> to vector<256x1xi32>
    %31 = arith.sitofp %30 : vector<256x1xi32> to vector<256x1xf32>
    %32 = vector.broadcast %31 : vector<256x1xf32> to vector<256x128xf32>
    %33 = arith.mulf %20, %32 : vector<256x128xf32>
    %34 = vector.broadcast %31 : vector<256x1xf32> to vector<256x128xf32>
    %35 = arith.mulf %23, %34 : vector<256x128xf32>
    %cst_11 = arith.constant dense<0.000000e+00> : vector<128xf32>
    %36 = vector.multi_reduction <add>, %33, %cst_11 [0] : vector<256x128xf32> to vector<128xf32>
    %37 = vector.shape_cast %36 : vector<128xf32> to vector<1x128xf32>
    %c0_12 = arith.constant 0 : index
    %c0_13 = arith.constant 0 : index
    %38 = vector.load %arg5[%c0_12, %c0_13] : memref<1x128xf32, #tpu.memory_space<vmem>>, vector<1x128xf32>
    tpu.vector_store %arg5[%c0_12, %c0_13], %37 {strides = array<i32>} : memref<1x128xf32, #tpu.memory_space<vmem>>, vector<1x128xf32>,
    %39 = arith.mulf %35, %35 : vector<256x128xf32>
    %40 = vector.shape_cast %39 : vector<256x128xf32> to vector<1x256x128xf32>
    %cst_14 = arith.constant dense<0.000000e+00> : vector<1xf32>
    %41 = vector.multi_reduction <add>, %40, %cst_14 [1, 2] : vector<1x256x128xf32> to vector<1xf32>
    %42 = vector.shape_cast %41 : vector<1xf32> to vector<1x1x1xf32>
    %43 = vector.extract %42[0, 0, 0] : f32 from vector<1x1x1xf32>
    %44 = vector.broadcast %43 : f32 to vector<1x1xf32>
    %45 = vector.shape_cast %44 : vector<1x1xf32> to vector<1x1xf32>
    %46 = vector.broadcast %45 : vector<1x1xf32> to vector<1x128xf32>
    %c0_15 = arith.constant 0 : index
    %c0_16 = arith.constant 0 : index
    %47 = vector.load %arg6[%c0_15, %c0_16] : memref<1x128xf32, #tpu.memory_space<vmem>>, vector<1x128xf32>
    tpu.vector_store %arg6[%c0_15, %c0_16], %46 {strides = array<i32>} : memref<1x128xf32, #tpu.memory_space<vmem>>, vector<1x128xf32>,
    return
  }
  func.func @transform_0(%arg0: i32) -> (i32, i32) {
    %c0_i32 = arith.constant 0 : i32
    %c0_i32_0 = arith.constant 0 : i32
    return %arg0, %c0_i32 : i32, i32
  }
  func.func @transform_1(%arg0: i32) -> (i32, i32) {
    %c0_i32 = arith.constant 0 : i32
    %c0_i32_0 = arith.constant 0 : i32
    %c0_i32_1 = arith.constant 0 : i32
    return %c0_i32, %c0_i32_0 : i32, i32
  }
  func.func @transform_2(%arg0: i32) -> (i32, i32) {
    %c0_i32 = arith.constant 0 : i32
    %c0_i32_0 = arith.constant 0 : i32
    %c0_i32_1 = arith.constant 0 : i32
    return %c0_i32, %c0_i32_0 : i32, i32
  }
  func.func @transform_3(%arg0: i32) -> (i32, i32) {
    %c0_i32 = arith.constant 0 : i32
    %c0_i32_0 = arith.constant 0 : i32
    return %arg0, %c0_i32 : i32, i32
  }
  func.func @transform_4(%arg0: i32) -> (i32, i32) {
    %c0_i32 = arith.constant 0 : i32
    %c0_i32_0 = arith.constant 0 : i32
    return %arg0, %c0_i32 : i32, i32
  }
  func.func @transform_5(%arg0: i32) -> (i32, i32) {
    %c0_i32 = arith.constant 0 : i32
    %c0_i32_0 = arith.constant 0 : i32
    return %arg0, %c0_i32 : i32, i32
  }
}

</mosaic_0001>

<llo_original>
// kernel: tpu_custom_call.1
$region0: #{tpu_custom_call.1}
  #allocation0 [shape = 'u32[]', space=smem, size = 0x4, offset = 0x4, fixed_abs, tag = 'smem constant byte address 0x4 - core index']
  #allocation1 [shape = 'u32[72,128]{1,0:T(1,128)}', space=vmem, size = 0x9000, scoped, tag = 'internal scratch']
  %s0 = inlined_call_operand.hbm [shape: f32[256,128], index: 0, kind: input, shape index: {}]
  %s1 = inlined_call_operand.hbm [shape: f32[128,128], index: 1, kind: input, shape index: {}]
  %s2 = inlined_call_operand.vmem [shape: f32[1,128], index: 2, kind: input, shape index: {}]
  %s3 = inlined_call_operand.hbm [shape: f32[256,128], index: 3, kind: output, shape index: {0}]
  %s4 = inlined_call_operand.hbm [shape: f32[1,128], index: 4, kind: output, shape index: {1}]
  %s5 = inlined_call_operand.hbm [shape: f32[1,128], index: 5, kind: output, shape index: {2}]
  %6 = xla_tuple %s3, %s4, %s5
  %s7 = sld [smem:[#allocation0]]
  $region46: #{tpu_custom_call.1} parent=0
    _
  %s9 = ssub.s32 1, %s7
  %s10 = scalar_select 0, %s9, %s7
  $region1: #{tpu_custom_call.1} parent=0
    #allocation2 [shape = 'u8[131072]{0}', space=vmem, size = 0x20000, scoped, tag = 'input window, operand 0, single buffered']
    #allocation3 [shape = 's32[1]{0}', space=sflag, size = 0x4, scoped, tag = 'scoped memory for tpu_custom_call.1']
    #allocation4 [shape = 's32[1]{0}', space=sflag, size = 0x4, scoped, tag = 'scoped memory for tpu_custom_call.1']
    #allocation5 [shape = 'u8[65536]{0}', space=vmem, size = 0x10000, scoped, tag = 'input window, operand 1, single buffered']
    #allocation6 [shape = 's32[1]{0}', space=sflag, size = 0x4, scoped, tag = 'scoped memory for tpu_custom_call.1']
    #allocation7 [shape = 'u8[131072]{0}', space=vmem, size = 0x20000, scoped, tag = 'output window, operand 0, single buffered']
    #allocation8 [shape = 'u8[512]{0}', space=vmem, size = 0x400, scoped, tag = 'output window, operand 1, single buffered']
    #allocation9 [shape = 's32[1]{0}', space=sflag, size = 0x4, scoped, tag = 'scoped memory for tpu_custom_call.1']
    #allocation10 [shape = 'u8[512]{0}', space=vmem, size = 0x400, scoped, tag = 'output window, operand 2, single buffered']
    %11 = vsyncpa [#allocation3], 0
    %12 = vsyncpa [#allocation6], 0
    %13 = vsyncpa [#allocation4], 0
    %14 = vsyncpa [#allocation9], 0
    // Predicated region
    $region2: #{tpu_custom_call.1} parent=1 // pred_check
      _
    $region3: #{tpu_custom_call.1} parent=1 // pred_check_branch
      %16 = sbr.rel (0) target = $region5
    $region4: #{tpu_custom_call.1} parent=1 // pred_region
      %18 = vsyncadd [#allocation3], 0
      %s19 = sshll.u32 %s0, 4
      %s20 = int_to_ptr.hbm [resolvable:$true] %s19
      %s21 = sshll.u32 [#allocation2], 4
      %s22 = int_to_ptr.vmem [resolvable:$true] %s21
      %27 = dma.hbm_to_vmem [thread:$0]  %s20, 4096, %s22, [#allocation3], 128, 128, 8
    $region5: #{tpu_custom_call.1} parent=1 // pred_fallthru
      _
    // Predicated region
    $region6: #{tpu_custom_call.1} parent=1 // pred_check
      _
    $region7: #{tpu_custom_call.1} parent=1 // pred_check_branch
      %29 = sbr.rel (0) target = $region9
    $region8: #{tpu_custom_call.1} parent=1 // pred_region
      %31 = vsyncadd [#allocation6], 0
      %s32 = sshll.u32 %s1, 4
      %s33 = int_to_ptr.hbm [resolvable:$true] %s32
      %s34 = sshll.u32 [#allocation5], 4
      %s35 = int_to_ptr.vmem [resolvable:$true] %s34
      %40 = dma.hbm_to_vmem [thread:$0]  %s33, 2048, %s35, [#allocation6], 128, 128, 8
    $region9: #{tpu_custom_call.1} parent=1 // pred_fallthru
      _
    // Predicated region
    $region10: #{tpu_custom_call.1} parent=1 // pred_check
      _
    $region11: #{tpu_custom_call.1} parent=1 // pred_check_branch
      %42 = sbr.rel (0) target = $region13
    $region12: #{tpu_custom_call.1} parent=1 // pred_region
      _
    $region13: #{tpu_custom_call.1} parent=1 // pred_fallthru
      _
    // Predicated region
    $region14: #{tpu_custom_call.1} parent=1 // pred_check
      _
    $region15: #{tpu_custom_call.1} parent=1 // pred_check_branch
      %44 = sbr.rel (0) target = $region17
    $region16: #{tpu_custom_call.1} parent=1 // pred_region
      %46 = dma.done [#allocation3], 4096
    $region17: #{tpu_custom_call.1} parent=1 // pred_fallthru
      _
    // Predicated region
    $region18: #{tpu_custom_call.1} parent=1 // pred_check
      _
    $region19: #{tpu_custom_call.1} parent=1 // pred_check_branch
      %48 = sbr.rel (0) target = $region21
    $region20: #{tpu_custom_call.1} parent=1 // pred_region
      %50 = dma.done [#allocation6], 2048
    $region21: #{tpu_custom_call.1} parent=1 // pred_fallthru
      _
    %v51 = vld [vmem:[#allocation2] sm:$0xff]
    %v52 = vld [vmem:[#allocation2 + $0x8] sm:$0xff]
    %v53 = vld [vmem:[#allocation2 + $0x10] sm:$0xff]
    %v54 = vld [vmem:[#allocation2 + $0x18] sm:$0xff]
    %v55 = vld [vmem:[#allocation2 + $0x20] sm:$0xff]
    %v56 = vld [vmem:[#allocation2 + $0x28] sm:$0xff]
    %v57 = vld [vmem:[#allocation2 + $0x30] sm:$0xff]
    %v58 = vld [vmem:[#allocation2 + $0x38] sm:$0xff]
    %v59 = vld [vmem:[#allocation2 + $0x40] sm:$0xff]
    %v60 = vld [vmem:[#allocation2 + $0x48] sm:$0xff]
    %v61 = vld [vmem:[#allocation2 + $0x50] sm:$0xff]
    %v62 = vld [vmem:[#allocation2 + $0x58] sm:$0xff]
    %v63 = vld [vmem:[#allocation2 + $0x60] sm:$0xff]
    %v64 = vld [vmem:[#allocation2 + $0x68] sm:$0xff]
    %v65 = vld [vmem:[#allocation2 + $0x70] sm:$0xff]
    %v66 = vld [vmem:[#allocation2 + $0x78] sm:$0xff]
    %v67 = vld [vmem:[#allocation2 + $0x80] sm:$0xff]
    %v68 = vld [vmem:[#allocation2 + $0x88] sm:$0xff]
    %v69 = vld [vmem:[#allocation2 + $0x90] sm:$0xff]
    %v70 = vld [vmem:[#allocation2 + $0x98] sm:$0xff]
    %v71 = vld [vmem:[#allocation2 + $0xa0] sm:$0xff]
    %v72 = vld [vmem:[#allocation2 + $0xa8] sm:$0xff]
    %v73 = vld [vmem:[#allocation2 + $0xb0] sm:$0xff]
    %v74 = vld [vmem:[#allocation2 + $0xb8] sm:$0xff]
    %v75 = vld [vmem:[#allocation2 + $0xc0] sm:$0xff]
    %v76 = vld [vmem:[#allocation2 + $0xc8] sm:$0xff]
    %v77 = vld [vmem:[#allocation2 + $0xd0] sm:$0xff]
    %v78 = vld [vmem:[#allocation2 + $0xd8] sm:$0xff]
    %v79 = vld [vmem:[#allocation2 + $0xe0] sm:$0xff]
    %v80 = vld [vmem:[#allocation2 + $0xe8] sm:$0xff]
    %v81 = vld [vmem:[#allocation2 + $0xf0] sm:$0xff]
    %v82 = vld [vmem:[#allocation2 + $0xf8] sm:$0xff]
    %v83 = vld [vmem:[#allocation5] sm:$0xff]
    %v84 = vld [vmem:[#allocation5 + $0x8] sm:$0xff]
    %v85 = vld [vmem:[#allocation5 + $0x10] sm:$0xff]
    %v86 = vld [vmem:[#allocation5 + $0x18] sm:$0xff]
    %v87 = vld [vmem:[#allocation5 + $0x20] sm:$0xff]
    %v88 = vld [vmem:[#allocation5 + $0x28] sm:$0xff]
    %v89 = vld [vmem:[#allocation5 + $0x30] sm:$0xff]
    %v90 = vld [vmem:[#allocation5 + $0x38] sm:$0xff]
    %v91 = vld [vmem:[#allocation5 + $0x40] sm:$0xff]
    %v92 = vld [vmem:[#allocation5 + $0x48] sm:$0xff]
    %v93 = vld [vmem:[#allocation5 + $0x50] sm:$0xff]
    %v94 = vld [vmem:[#allocation5 + $0x58] sm:$0xff]
    %v95 = vld [vmem:[#allocation5 + $0x60] sm:$0xff]
    %v96 = vld [vmem:[#allocation5 + $0x68] sm:$0xff]
    %v97 = vld [vmem:[#allocation5 + $0x70] sm:$0xff]
    %v98 = vld [vmem:[#allocation5 + $0x78] sm:$0xff]
    %v99 = vld [vmem:[%s2] sm:$0x1]
    %100 = vmatpush.xpose.msra.mxu0 %v98
    %101 = vmatpush.xpose.msra.mxu0 %v97
    %102 = vmatpush.xpose.msra.mxu0 %v96
    %103 = vmatpush.xpose.msra.mxu0 %v95
    %104 = vmatpush.xpose.msra.mxu0 %v94
    %105 = vmatpush.xpose.msra.mxu0 %v93
    %106 = vmatpush.xpose.msra.mxu0 %v92
    %107 = vmatpush.xpose.msra.mxu0 %v91
    %108 = vmatpush.xpose.msra.mxu0 %v90
    %109 = vmatpush.xpose.msra.mxu0 %v89
    %110 = vmatpush.xpose.msra.mxu0 %v88
    %111 = vmatpush.xpose.msra.mxu0 %v87
    %112 = vmatpush.xpose.msra.mxu0 %v86
    %113 = vmatpush.xpose.msra.mxu0 %v85
    %114 = vmatpush.xpose.msra.mxu0 %v84
    %115 = vmatpush.xpose.msra.mxu0 %v83
    %116 = vmatmul.f32.gmra.mxu0 %v51
    %v117 = vpop.f32.mrf.mxu0
    %v118 = vadd.f32 0.0, %v117
    %119 = vmatmul.f32.gmra.mxu0 %v52
    %v120 = vpop.f32.mrf.mxu0
    %v121 = vadd.f32 0.0, %v120
    %122 = vmatmul.f32.gmra.mxu0 %v53
    %v123 = vpop.f32.mrf.mxu0
    %v124 = vadd.f32 0.0, %v123
    %125 = vmatmul.f32.gmra.mxu0 %v54
    %v126 = vpop.f32.mrf.mxu0
    %v127 = vadd.f32 0.0, %v126
    %128 = vmatmul.f32.gmra.mxu0 %v55
    %v129 = vpop.f32.mrf.mxu0
    %v130 = vadd.f32 0.0, %v129
    %131 = vmatmul.f32.gmra.mxu0 %v56
    %v132 = vpop.f32.mrf.mxu0
    %v133 = vadd.f32 0.0, %v132
    %134 = vmatmul.f32.gmra.mxu0 %v57
    %v135 = vpop.f32.mrf.mxu0
    %v136 = vadd.f32 0.0, %v135
    %137 = vmatmul.f32.gmra.mxu0 %v58
    %v138 = vpop.f32.mrf.mxu0
    %v139 = vadd.f32 0.0, %v138
    %140 = vmatmul.f32.gmra.mxu0 %v59
    %v141 = vpop.f32.mrf.mxu0
    %v142 = vadd.f32 0.0, %v141
    %143 = vmatmul.f32.gmra.mxu0 %v60
    %v144 = vpop.f32.mrf.mxu0
    %v145 = vadd.f32 0.0, %v144
    %146 = vmatmul.f32.gmra.mxu0 %v61
    %v147 = vpop.f32.mrf.mxu0
    %v148 = vadd.f32 0.0, %v147
    %149 = vmatmul.f32.gmra.mxu0 %v62
    %v150 = vpop.f32.mrf.mxu0
    %v151 = vadd.f32 0.0, %v150
    %152 = vmatmul.f32.gmra.mxu0 %v63
    %v153 = vpop.f32.mrf.mxu0
    %v154 = vadd.f32 0.0, %v153
    %155 = vmatmul.f32.gmra.mxu0 %v64
    %v156 = vpop.f32.mrf.mxu0
    %v157 = vadd.f32 0.0, %v156
    %158 = vmatmul.f32.gmra.mxu0 %v65
    %v159 = vpop.f32.mrf.mxu0
    %v160 = vadd.f32 0.0, %v159
    %161 = vmatmul.f32.gmra.mxu0 %v66
    %v162 = vpop.f32.mrf.mxu0
    %v163 = vadd.f32 0.0, %v162
    %164 = vmatmul.f32.gmra.mxu0 %v67
    %v165 = vpop.f32.mrf.mxu0
    %v166 = vadd.f32 0.0, %v165
    %167 = vmatmul.f32.gmra.mxu0 %v68
    %v168 = vpop.f32.mrf.mxu0
    %v169 = vadd.f32 0.0, %v168
    %170 = vmatmul.f32.gmra.mxu0 %v69
    %v171 = vpop.f32.mrf.mxu0
    %v172 = vadd.f32 0.0, %v171
    %173 = vmatmul.f32.gmra.mxu0 %v70
    %v174 = vpop.f32.mrf.mxu0
    %v175 = vadd.f32 0.0, %v174
    %176 = vmatmul.f32.gmra.mxu0 %v71
    %v177 = vpop.f32.mrf.mxu0
    %v178 = vadd.f32 0.0, %v177
    %179 = vmatmul.f32.gmra.mxu0 %v72
    %v180 = vpop.f32.mrf.mxu0
    %v181 = vadd.f32 0.0, %v180
    %182 = vmatmul.f32.gmra.mxu0 %v73
    %v183 = vpop.f32.mrf.mxu0
    %v184 = vadd.f32 0.0, %v183
    %185 = vmatmul.f32.gmra.mxu0 %v74
    %v186 = vpop.f32.mrf.mxu0
    %v187 = vadd.f32 0.0, %v186
    %188 = vmatmul.f32.gmra.mxu0 %v75
    %v189 = vpop.f32.mrf.mxu0
    %v190 = vadd.f32 0.0, %v189
    %191 = vmatmul.f32.gmra.mxu0 %v76
    %v192 = vpop.f32.mrf.mxu0
    %v193 = vadd.f32 0.0, %v192
    %194 = vmatmul.f32.gmra.mxu0 %v77
    %v195 = vpop.f32.mrf.mxu0
    %v196 = vadd.f32 0.0, %v195
    %197 = vmatmul.f32.gmra.mxu0 %v78
    %v198 = vpop.f32.mrf.mxu0
    %v199 = vadd.f32 0.0, %v198
    %200 = vmatmul.f32.gmra.mxu0 %v79
    %v201 = vpop.f32.mrf.mxu0
    %v202 = vadd.f32 0.0, %v201
    %203 = vmatmul.f32.gmra.mxu0 %v80
    %v204 = vpop.f32.mrf.mxu0
    %v205 = vadd.f32 0.0, %v204
    %206 = vmatmul.f32.gmra.mxu0 %v81
    %v207 = vpop.f32.mrf.mxu0
    %v208 = vadd.f32 0.0, %v207
    %209 = vmatmul.f32.gmra.mxu0 %v82
    %v210 = vpop.f32.mrf.mxu0
    %v211 = vadd.f32 0.0, %v210
    %212 = vdwg.mxu0
    %v213 = vmul.f32 %v118, 2.0
    %v214 = vmul.f32 %v121, 2.0
    %v215 = vmul.f32 %v124, 2.0
    %v216 = vmul.f32 %v127, 2.0
    %v217 = vmul.f32 %v130, 2.0
    %v218 = vmul.f32 %v133, 2.0
    %v219 = vmul.f32 %v136, 2.0
    %v220 = vmul.f32 %v139, 2.0
    %v221 = vmul.f32 %v142, 2.0
    %v222 = vmul.f32 %v145, 2.0
    %v223 = vmul.f32 %v148, 2.0
    %v224 = vmul.f32 %v151, 2.0
    %v225 = vmul.f32 %v154, 2.0
    %v226 = vmul.f32 %v157, 2.0
    %v227 = vmul.f32 %v160, 2.0
    %v228 = vmul.f32 %v163, 2.0
    %v229 = vmul.f32 %v166, 2.0
    %v230 = vmul.f32 %v169, 2.0
    %v231 = vmul.f32 %v172, 2.0
    %v232 = vmul.f32 %v175, 2.0
    %v233 = vmul.f32 %v178, 2.0
    %v234 = vmul.f32 %v181, 2.0
    %v235 = vmul.f32 %v184, 2.0
    %v236 = vmul.f32 %v187, 2.0
    %v237 = vmul.f32 %v190, 2.0
    %v238 = vmul.f32 %v193, 2.0
    %v239 = vmul.f32 %v196, 2.0
    %v240 = vmul.f32 %v199, 2.0
    %v241 = vmul.f32 %v202, 2.0
    %v242 = vmul.f32 %v205, 2.0
    %v243 = vmul.f32 %v208, 2.0
    %v244 = vmul.f32 %v211, 2.0
    %v246 = vperm.slane %v99, 0
    %v248 = vsub.f32 %v246, %v213
    %v249 = vsub.f32 %v246, %v214
    %v250 = vsub.f32 %v246, %v215
    %v251 = vsub.f32 %v246, %v216
    %v252 = vsub.f32 %v246, %v217
    %v253 = vsub.f32 %v246, %v218
    %v254 = vsub.f32 %v246, %v219
    %v255 = vsub.f32 %v246, %v220
    %v256 = vsub.f32 %v246, %v221
    %v257 = vsub.f32 %v246, %v222
    %v258 = vsub.f32 %v246, %v223
    %v259 = vsub.f32 %v246, %v224
    %v260 = vsub.f32 %v246, %v225
    %v261 = vsub.f32 %v246, %v226
    %v262 = vsub.f32 %v246, %v227
    %v263 = vsub.f32 %v246, %v228
    %v264 = vsub.f32 %v246, %v229
    %v265 = vsub.f32 %v246, %v230
    %v266 = vsub.f32 %v246, %v231
    %v267 = vsub.f32 %v246, %v232
    %v268 = vsub.f32 %v246, %v233
    %v269 = vsub.f32 %v246, %v234
    %v270 = vsub.f32 %v246, %v235
    %v271 = vsub.f32 %v246, %v236
    %v272 = vsub.f32 %v246, %v237
    %v273 = vsub.f32 %v246, %v238
    %v274 = vsub.f32 %v246, %v239
    %v275 = vsub.f32 %v246, %v240
    %v276 = vsub.f32 %v246, %v241
    %v277 = vsub.f32 %v246, %v242
    %v278 = vsub.f32 %v246, %v243
    %v279 = vsub.f32 %v246, %v244
    %280 = vmin.xlane.f32.xlu0 %v248
    %v281 = vpop.xlane.xlu0 %280
    %282 = vmin.xlane.f32.xlu0 %v249
    %v283 = vpop.xlane.xlu0 %282
    %284 = vmin.xlane.f32.xlu0 %v250
    %v285 = vpop.xlane.xlu0 %284
    %286 = vmin.xlane.f32.xlu0 %v251
    %v287 = vpop.xlane.xlu0 %286
    %288 = vmin.xlane.f32.xlu0 %v252
    %v289 = vpop.xlane.xlu0 %288
    %290 = vmin.xlane.f32.xlu0 %v253
    %v291 = vpop.xlane.xlu0 %290
    %292 = vmin.xlane.f32.xlu0 %v254
    %v293 = vpop.xlane.xlu0 %292
    %294 = vmin.xlane.f32.xlu0 %v255
    %v295 = vpop.xlane.xlu0 %294
    %296 = vmin.xlane.f32.xlu0 %v256
    %v297 = vpop.xlane.xlu0 %296
    %298 = vmin.xlane.f32.xlu0 %v257
    %v299 = vpop.xlane.xlu0 %298
    %300 = vmin.xlane.f32.xlu0 %v258
    %v301 = vpop.xlane.xlu0 %300
    %302 = vmin.xlane.f32.xlu0 %v259
    %v303 = vpop.xlane.xlu0 %302
    %304 = vmin.xlane.f32.xlu0 %v260
    %v305 = vpop.xlane.xlu0 %304
    %306 = vmin.xlane.f32.xlu0 %v261
    %v307 = vpop.xlane.xlu0 %306
    %308 = vmin.xlane.f32.xlu0 %v262
    %v309 = vpop.xlane.xlu0 %308
    %310 = vmin.xlane.f32.xlu0 %v263
    %v311 = vpop.xlane.xlu0 %310
    %312 = vmin.xlane.f32.xlu0 %v264
    %v313 = vpop.xlane.xlu0 %312
    %314 = vmin.xlane.f32.xlu0 %v265
    %v315 = vpop.xlane.xlu0 %314
    %316 = vmin.xlane.f32.xlu0 %v266
    %v317 = vpop.xlane.xlu0 %316
    %318 = vmin.xlane.f32.xlu0 %v267
    %v319 = vpop.xlane.xlu0 %318
    %320 = vmin.xlane.f32.xlu0 %v268
    %v321 = vpop.xlane.xlu0 %320
    %322 = vmin.xlane.f32.xlu0 %v269
    %v323 = vpop.xlane.xlu0 %322
    %324 = vmin.xlane.f32.xlu0 %v270
    %v325 = vpop.xlane.xlu0 %324
    %326 = vmin.xlane.f32.xlu0 %v271
    %v327 = vpop.xlane.xlu0 %326
    %328 = vmin.xlane.f32.xlu0 %v272
    %v329 = vpop.xlane.xlu0 %328
    %330 = vmin.xlane.f32.xlu0 %v273
    %v331 = vpop.xlane.xlu0 %330
    %332 = vmin.xlane.f32.xlu0 %v274
    %v333 = vpop.xlane.xlu0 %332
    %334 = vmin.xlane.f32.xlu0 %v275
    %v335 = vpop.xlane.xlu0 %334
    %336 = vmin.xlane.f32.xlu0 %v276
    %v337 = vpop.xlane.xlu0 %336
    %338 = vmin.xlane.f32.xlu0 %v277
    %v339 = vpop.xlane.xlu0 %338
    %340 = vmin.xlane.f32.xlu0 %v278
    %v341 = vpop.xlane.xlu0 %340
    %342 = vmin.xlane.f32.xlu0 %v279
    %v343 = vpop.xlane.xlu0 %342
    %v344 = vlaneseq
    %v345 = vand.u32 %v344, 127
    %vm346 = vcmp.eq.f32.partialorder %v248, %v281
    %vm347 = vcmp.eq.f32.partialorder %v249, %v283
    %vm348 = vcmp.eq.f32.partialorder %v250, %v285
    %vm349 = vcmp.eq.f32.partialorder %v251, %v287
    %vm350 = vcmp.eq.f32.partialorder %v252, %v289
    %vm351 = vcmp.eq.f32.partialorder %v253, %v291
    %vm352 = vcmp.eq.f32.partialorder %v254, %v293
    %vm353 = vcmp.eq.f32.partialorder %v255, %v295
    %vm354 = vcmp.eq.f32.partialorder %v256, %v297
    %vm355 = vcmp.eq.f32.partialorder %v257, %v299
    %vm356 = vcmp.eq.f32.partialorder %v258, %v301
    %vm357 = vcmp.eq.f32.partialorder %v259, %v303
    %vm358 = vcmp.eq.f32.partialorder %v260, %v305
    %vm359 = vcmp.eq.f32.partialorder %v261, %v307
    %vm360 = vcmp.eq.f32.partialorder %v262, %v309
    %vm361 = vcmp.eq.f32.partialorder %v263, %v311
    %vm362 = vcmp.eq.f32.partialorder %v264, %v313
    %vm363 = vcmp.eq.f32.partialorder %v265, %v315
    %vm364 = vcmp.eq.f32.partialorder %v266, %v317
    %vm365 = vcmp.eq.f32.partialorder %v267, %v319
    %vm366 = vcmp.eq.f32.partialorder %v268, %v321
    %vm367 = vcmp.eq.f32.partialorder %v269, %v323
    %vm368 = vcmp.eq.f32.partialorder %v270, %v325
    %vm369 = vcmp.eq.f32.partialorder %v271, %v327
    %vm370 = vcmp.eq.f32.partialorder %v272, %v329
    %vm371 = vcmp.eq.f32.partialorder %v273, %v331
    %vm372 = vcmp.eq.f32.partialorder %v274, %v333
    %vm373 = vcmp.eq.f32.partialorder %v275, %v335
    %vm374 = vcmp.eq.f32.partialorder %v276, %v337
    %vm375 = vcmp.eq.f32.partialorder %v277, %v339
    %vm376 = vcmp.eq.f32.partialorder %v278, %v341
    %vm377 = vcmp.eq.f32.partialorder %v279, %v343
    %v378 = vsel %vm346, %v345, 128
    %v379 = vsel %vm347, %v345, 128
    %v380 = vsel %vm348, %v345, 128
    %v381 = vsel %vm349, %v345, 128
    %v382 = vsel %vm350, %v345, 128
    %v383 = vsel %vm351, %v345, 128
    %v384 = vsel %vm352, %v345, 128
    %v385 = vsel %vm353, %v345, 128
    %v386 = vsel %vm354, %v345, 128
    %v387 = vsel %vm355, %v345, 128
    %v388 = vsel %vm356, %v345, 128
    %v389 = vsel %vm357, %v345, 128
    %v390 = vsel %vm358, %v345, 128
    %v391 = vsel %vm359, %v345, 128
    %v392 = vsel %vm360, %v345, 128
    %v393 = vsel %vm361, %v345, 128
    %v394 = vsel %vm362, %v345, 128
    %v395 = vsel %vm363, %v345, 128
    %v396 = vsel %vm364, %v345, 128
    %v397 = vsel %vm365, %v345, 128
    %v398 = vsel %vm366, %v345, 128
    %v399 = vsel %vm367, %v345, 128
    %v400 = vsel %vm368, %v345, 128
    %v401 = vsel %vm369, %v345, 128
    %v402 = vsel %vm370, %v345, 128
    %v403 = vsel %vm371, %v345, 128
    %v404 = vsel %vm372, %v345, 128
    %v405 = vsel %vm373, %v345, 128
    %v406 = vsel %vm374, %v345, 128
    %v407 = vsel %vm375, %v345, 128
    %v408 = vsel %vm376, %v345, 128
    %v409 = vsel %vm377, %v345, 128
    %v410 = vand.u32 %v378, 65535
    %v411 = vshra.s32 %v378, 16
    %v412 = vcvt.s32.f32 %v410
    %v413 = vcvt.s32.f32 %v411
    %414 = vmin.xlane.f32.xlu0 %v413
    %v415 = vpop.xlane.xlu0 %414
    %vm416 = vcmp.eq.f32.partialorder %v413, %v415
    %v417 = vsel %vm416, %v412, inf
    %418 = vmin.xlane.f32.xlu0 %v417
    %v419 = vpop.xlane.xlu0 %418
    %v420 = vcvt.f32.s32 %v419
    %v421 = vcvt.f32.s32 %v415
    %v422 = vshll.u32 %v421, 16
    %v423 = vadd.s32 %v422, %v420
    %v424 = vand.u32 %v379, 65535
    %v425 = vshra.s32 %v379, 16
    %v426 = vcvt.s32.f32 %v424
    %v427 = vcvt.s32.f32 %v425
    %428 = vmin.xlane.f32.xlu0 %v427
    %v429 = vpop.xlane.xlu0 %428
    %vm430 = vcmp.eq.f32.partialorder %v427, %v429
    %v431 = vsel %vm430, %v426, inf
    %432 = vmin.xlane.f32.xlu0 %v431
    %v433 = vpop.xlane.xlu0 %432
    %v434 = vcvt.f32.s32 %v433
    %v435 = vcvt.f32.s32 %v429
    %v436 = vshll.u32 %v435, 16
    %v437 = vadd.s32 %v436, %v434
    %v438 = vand.u32 %v380, 65535
    %v439 = vshra.s32 %v380, 16
    %v440 = vcvt.s32.f32 %v438
    %v441 = vcvt.s32.f32 %v439
    %442 = vmin.xlane.f32.xlu0 %v441
    %v443 = vpop.xlane.xlu0 %442
    %vm444 = vcmp.eq.f32.partialorder %v441, %v443
    %v445 = vsel %vm444, %v440, inf
    %446 = vmin.xlane.f32.xlu0 %v445
    %v447 = vpop.xlane.xlu0 %446
    %v448 = vcvt.f32.s32 %v447
    %v449 = vcvt.f32.s32 %v443
    %v450 = vshll.u32 %v449, 16
    %v451 = vadd.s32 %v450, %v448
    %v452 = vand.u32 %v381, 65535
    %v453 = vshra.s32 %v381, 16
    %v454 = vcvt.s32.f32 %v452
    %v455 = vcvt.s32.f32 %v453
    %456 = vmin.xlane.f32.xlu0 %v455
    %v457 = vpop.xlane.xlu0 %456
    %vm458 = vcmp.eq.f32.partialorder %v455, %v457
    %v459 = vsel %vm458, %v454, inf
    %460 = vmin.xlane.f32.xlu0 %v459
    %v461 = vpop.xlane.xlu0 %460
    %v462 = vcvt.f32.s32 %v461
    %v463 = vcvt.f32.s32 %v457
    %v464 = vshll.u32 %v463, 16
    %v465 = vadd.s32 %v464, %v462
    %v466 = vand.u32 %v382, 65535
    %v467 = vshra.s32 %v382, 16
    %v468 = vcvt.s32.f32 %v466
    %v469 = vcvt.s32.f32 %v467
    %470 = vmin.xlane.f32.xlu0 %v469
    %v471 = vpop.xlane.xlu0 %470
    %vm472 = vcmp.eq.f32.partialorder %v469, %v471
    %v473 = vsel %vm472, %v468, inf
    %474 = vmin.xlane.f32.xlu0 %v473
    %v475 = vpop.xlane.xlu0 %474
    %v476 = vcvt.f32.s32 %v475
    %v477 = vcvt.f32.s32 %v471
    %v478 = vshll.u32 %v477, 16
    %v479 = vadd.s32 %v478, %v476
    %v480 = vand.u32 %v383, 65535
    %v481 = vshra.s32 %v383, 16
    %v482 = vcvt.s32.f32 %v480
    %v483 = vcvt.s32.f32 %v481
    %484 = vmin.xlane.f32.xlu0 %v483
    %v485 = vpop.xlane.xlu0 %484
    %vm486 = vcmp.eq.f32.partialorder %v483, %v485
    %v487 = vsel %vm486, %v482, inf
    %488 = vmin.xlane.f32.xlu0 %v487
    %v489 = vpop.xlane.xlu0 %488
    %v490 = vcvt.f32.s32 %v489
    %v491 = vcvt.f32.s32 %v485
    %v492 = vshll.u32 %v491, 16
    %v493 = vadd.s32 %v492, %v490
    %v494 = vand.u32 %v384, 65535
    %v495 = vshra.s32 %v384, 16
    %v496 = vcvt.s32.f32 %v494
    %v497 = vcvt.s32.f32 %v495
    %498 = vmin.xlane.f32.xlu0 %v497
    %v499 = vpop.xlane.xlu0 %498
    %vm500 = vcmp.eq.f32.partialorder %v497, %v499
    %v501 = vsel %vm500, %v496, inf
    %502 = vmin.xlane.f32.xlu0 %v501
    %v503 = vpop.xlane.xlu0 %502
    %v504 = vcvt.f32.s32 %v503
    %v505 = vcvt.f32.s32 %v499
    %v506 = vshll.u32 %v505, 16
    %v507 = vadd.s32 %v506, %v504
    %v508 = vand.u32 %v385, 65535
    %v509 = vshra.s32 %v385, 16
    %v510 = vcvt.s32.f32 %v508
    %v511 = vcvt.s32.f32 %v509
    %512 = vmin.xlane.f32.xlu0 %v511
    %v513 = vpop.xlane.xlu0 %512
    %vm514 = vcmp.eq.f32.partialorder %v511, %v513
    %v515 = vsel %vm514, %v510, inf
    %516 = vmin.xlane.f32.xlu0 %v515
    %v517 = vpop.xlane.xlu0 %516
    %v518 = vcvt.f32.s32 %v517
    %v519 = vcvt.f32.s32 %v513
    %v520 = vshll.u32 %v519, 16
    %v521 = vadd.s32 %v520, %v518
    %v522 = vand.u32 %v386, 65535
    %v523 = vshra.s32 %v386, 16
    %v524 = vcvt.s32.f32 %v522
    %v525 = vcvt.s32.f32 %v523
    %526 = vmin.xlane.f32.xlu0 %v525
    %v527 = vpop.xlane.xlu0 %526
    %vm528 = vcmp.eq.f32.partialorder %v525, %v527
    %v529 = vsel %vm528, %v524, inf
    %530 = vmin.xlane.f32.xlu0 %v529
    %v531 = vpop.xlane.xlu0 %530
    %v532 = vcvt.f32.s32 %v531
    %v533 = vcvt.f32.s32 %v527
    %v534 = vshll.u32 %v533, 16
    %v535 = vadd.s32 %v534, %v532
    %v536 = vand.u32 %v387, 65535
    %v537 = vshra.s32 %v387, 16
    %v538 = vcvt.s32.f32 %v536
    %v539 = vcvt.s32.f32 %v537
    %540 = vmin.xlane.f32.xlu0 %v539
    %v541 = vpop.xlane.xlu0 %540
    %vm542 = vcmp.eq.f32.partialorder %v539, %v541
    %v543 = vsel %vm542, %v538, inf
    %544 = vmin.xlane.f32.xlu0 %v543
    %v545 = vpop.xlane.xlu0 %544
    %v546 = vcvt.f32.s32 %v545
    %v547 = vcvt.f32.s32 %v541
    %v548 = vshll.u32 %v547, 16
    %v549 = vadd.s32 %v548, %v546
    %v550 = vand.u32 %v388, 65535
    %v551 = vshra.s32 %v388, 16
    %v552 = vcvt.s32.f32 %v550
    %v553 = vcvt.s32.f32 %v551
    %554 = vmin.xlane.f32.xlu0 %v553
    %v555 = vpop.xlane.xlu0 %554
    %vm556 = vcmp.eq.f32.partialorder %v553, %v555
    %v557 = vsel %vm556, %v552, inf
    %558 = vmin.xlane.f32.xlu0 %v557
    %v559 = vpop.xlane.xlu0 %558
    %v560 = vcvt.f32.s32 %v559
    %v561 = vcvt.f32.s32 %v555
    %v562 = vshll.u32 %v561, 16
    %v563 = vadd.s32 %v562, %v560
    %v564 = vand.u32 %v389, 65535
    %v565 = vshra.s32 %v389, 16
    %v566 = vcvt.s32.f32 %v564
    %v567 = vcvt.s32.f32 %v565
    %568 = vmin.xlane.f32.xlu0 %v567
    %v569 = vpop.xlane.xlu0 %568
    %vm570 = vcmp.eq.f32.partialorder %v567, %v569
    %v571 = vsel %vm570, %v566, inf
    %572 = vmin.xlane.f32.xlu0 %v571
    %v573 = vpop.xlane.xlu0 %572
    %v574 = vcvt.f32.s32 %v573
    %v575 = vcvt.f32.s32 %v569
    %v576 = vshll.u32 %v575, 16
    %v577 = vadd.s32 %v576, %v574
    %v578 = vand.u32 %v390, 65535
    %v579 = vshra.s32 %v390, 16
    %v580 = vcvt.s32.f32 %v578
    %v581 = vcvt.s32.f32 %v579
    %582 = vmin.xlane.f32.xlu0 %v581
    %v583 = vpop.xlane.xlu0 %582
    %vm584 = vcmp.eq.f32.partialorder %v581, %v583
    %v585 = vsel %vm584, %v580, inf
    %586 = vmin.xlane.f32.xlu0 %v585
    %v587 = vpop.xlane.xlu0 %586
    %v588 = vcvt.f32.s32 %v587
    %v589 = vcvt.f32.s32 %v583
    %v590 = vshll.u32 %v589, 16
    %v591 = vadd.s32 %v590, %v588
    %v592 = vand.u32 %v391, 65535
    %v593 = vshra.s32 %v391, 16
    %v594 = vcvt.s32.f32 %v592
    %v595 = vcvt.s32.f32 %v593
    %596 = vmin.xlane.f32.xlu0 %v595
    %v597 = vpop.xlane.xlu0 %596
    %vm598 = vcmp.eq.f32.partialorder %v595, %v597
    %v599 = vsel %vm598, %v594, inf
    %600 = vmin.xlane.f32.xlu0 %v599
    %v601 = vpop.xlane.xlu0 %600
    %v602 = vcvt.f32.s32 %v601
    %v603 = vcvt.f32.s32 %v597
    %v604 = vshll.u32 %v603, 16
    %v605 = vadd.s32 %v604, %v602
    %v606 = vand.u32 %v392, 65535
    %v607 = vshra.s32 %v392, 16
    %v608 = vcvt.s32.f32 %v606
    %v609 = vcvt.s32.f32 %v607
    %610 = vmin.xlane.f32.xlu0 %v609
    %v611 = vpop.xlane.xlu0 %610
    %vm612 = vcmp.eq.f32.partialorder %v609, %v611
    %v613 = vsel %vm612, %v608, inf
    %614 = vmin.xlane.f32.xlu0 %v613
    %v615 = vpop.xlane.xlu0 %614
    %v616 = vcvt.f32.s32 %v615
    %v617 = vcvt.f32.s32 %v611
    %v618 = vshll.u32 %v617, 16
    %v619 = vadd.s32 %v618, %v616
    %v620 = vand.u32 %v393, 65535
    %v621 = vshra.s32 %v393, 16
    %v622 = vcvt.s32.f32 %v620
    %v623 = vcvt.s32.f32 %v621
    %624 = vmin.xlane.f32.xlu0 %v623
    %v625 = vpop.xlane.xlu0 %624
    %vm626 = vcmp.eq.f32.partialorder %v623, %v625
    %v627 = vsel %vm626, %v622, inf
    %628 = vmin.xlane.f32.xlu0 %v627
    %v629 = vpop.xlane.xlu0 %628
    %v630 = vcvt.f32.s32 %v629
    %v631 = vcvt.f32.s32 %v625
    %v632 = vshll.u32 %v631, 16
    %v633 = vadd.s32 %v632, %v630
    %v634 = vand.u32 %v394, 65535
    %v635 = vshra.s32 %v394, 16
    %v636 = vcvt.s32.f32 %v634
    %v637 = vcvt.s32.f32 %v635
    %638 = vmin.xlane.f32.xlu0 %v637
    %v639 = vpop.xlane.xlu0 %638
    %vm640 = vcmp.eq.f32.partialorder %v637, %v639
    %v641 = vsel %vm640, %v636, inf
    %642 = vmin.xlane.f32.xlu0 %v641
    %v643 = vpop.xlane.xlu0 %642
    %v644 = vcvt.f32.s32 %v643
    %v645 = vcvt.f32.s32 %v639
    %v646 = vshll.u32 %v645, 16
    %v647 = vadd.s32 %v646, %v644
    %v648 = vand.u32 %v395, 65535
    %v649 = vshra.s32 %v395, 16
    %v650 = vcvt.s32.f32 %v648
    %v651 = vcvt.s32.f32 %v649
    %652 = vmin.xlane.f32.xlu0 %v651
    %v653 = vpop.xlane.xlu0 %652
    %vm654 = vcmp.eq.f32.partialorder %v651, %v653
    %v655 = vsel %vm654, %v650, inf
    %656 = vmin.xlane.f32.xlu0 %v655
    %v657 = vpop.xlane.xlu0 %656
    %v658 = vcvt.f32.s32 %v657
    %v659 = vcvt.f32.s32 %v653
    %v660 = vshll.u32 %v659, 16
    %v661 = vadd.s32 %v660, %v658
    %v662 = vand.u32 %v396, 65535
    %v663 = vshra.s32 %v396, 16
    %v664 = vcvt.s32.f32 %v662
    %v665 = vcvt.s32.f32 %v663
    %666 = vmin.xlane.f32.xlu0 %v665
    %v667 = vpop.xlane.xlu0 %666
    %vm668 = vcmp.eq.f32.partialorder %v665, %v667
    %v669 = vsel %vm668, %v664, inf
    %670 = vmin.xlane.f32.xlu0 %v669
    %v671 = vpop.xlane.xlu0 %670
    %v672 = vcvt.f32.s32 %v671
    %v673 = vcvt.f32.s32 %v667
    %v674 = vshll.u32 %v673, 16
    %v675 = vadd.s32 %v674, %v672
    %v676 = vand.u32 %v397, 65535
    %v677 = vshra.s32 %v397, 16
    %v678 = vcvt.s32.f32 %v676
    %v679 = vcvt.s32.f32 %v677
    %680 = vmin.xlane.f32.xlu0 %v679
    %v681 = vpop.xlane.xlu0 %680
    %vm682 = vcmp.eq.f32.partialorder %v679, %v681
    %v683 = vsel %vm682, %v678, inf
    %684 = vmin.xlane.f32.xlu0 %v683
    %v685 = vpop.xlane.xlu0 %684
    %v686 = vcvt.f32.s32 %v685
    %v687 = vcvt.f32.s32 %v681
    %v688 = vshll.u32 %v687, 16
    %v689 = vadd.s32 %v688, %v686
    %v690 = vand.u32 %v398, 65535
    %v691 = vshra.s32 %v398, 16
    %v692 = vcvt.s32.f32 %v690
    %v693 = vcvt.s32.f32 %v691
    %694 = vmin.xlane.f32.xlu0 %v693
    %v695 = vpop.xlane.xlu0 %694
    %vm696 = vcmp.eq.f32.partialorder %v693, %v695
    %v697 = vsel %vm696, %v692, inf
    %698 = vmin.xlane.f32.xlu0 %v697
    %v699 = vpop.xlane.xlu0 %698
    %v700 = vcvt.f32.s32 %v699
    %v701 = vcvt.f32.s32 %v695
    %v702 = vshll.u32 %v701, 16
    %v703 = vadd.s32 %v702, %v700
    %v704 = vand.u32 %v399, 65535
    %v705 = vshra.s32 %v399, 16
    %v706 = vcvt.s32.f32 %v704
    %v707 = vcvt.s32.f32 %v705
    %708 = vmin.xlane.f32.xlu0 %v707
    %v709 = vpop.xlane.xlu0 %708
    %vm710 = vcmp.eq.f32.partialorder %v707, %v709
    %v711 = vsel %vm710, %v706, inf
    %712 = vmin.xlane.f32.xlu0 %v711
    %v713 = vpop.xlane.xlu0 %712
    %v714 = vcvt.f32.s32 %v713
    %v715 = vcvt.f32.s32 %v709
    %v716 = vshll.u32 %v715, 16
    %v717 = vadd.s32 %v716, %v714
    %v718 = vand.u32 %v400, 65535
    %v719 = vshra.s32 %v400, 16
    %v720 = vcvt.s32.f32 %v718
    %v721 = vcvt.s32.f32 %v719
    %722 = vmin.xlane.f32.xlu0 %v721
    %v723 = vpop.xlane.xlu0 %722
    %vm724 = vcmp.eq.f32.partialorder %v721, %v723
    %v725 = vsel %vm724, %v720, inf
    %726 = vmin.xlane.f32.xlu0 %v725
    %v727 = vpop.xlane.xlu0 %726
    %v728 = vcvt.f32.s32 %v727
    %v729 = vcvt.f32.s32 %v723
    %v730 = vshll.u32 %v729, 16
    %v731 = vadd.s32 %v730, %v728
    %v732 = vand.u32 %v401, 65535
    %v733 = vshra.s32 %v401, 16
    %v734 = vcvt.s32.f32 %v732
    %v735 = vcvt.s32.f32 %v733
    %736 = vmin.xlane.f32.xlu0 %v735
    %v737 = vpop.xlane.xlu0 %736
    %vm738 = vcmp.eq.f32.partialorder %v735, %v737
    %v739 = vsel %vm738, %v734, inf
    %740 = vmin.xlane.f32.xlu0 %v739
    %v741 = vpop.xlane.xlu0 %740
    %v742 = vcvt.f32.s32 %v741
    %v743 = vcvt.f32.s32 %v737
    %v744 = vshll.u32 %v743, 16
    %v745 = vadd.s32 %v744, %v742
    %v746 = vand.u32 %v402, 65535
    %v747 = vshra.s32 %v402, 16
    %v748 = vcvt.s32.f32 %v746
    %v749 = vcvt.s32.f32 %v747
    %750 = vmin.xlane.f32.xlu0 %v749
    %v751 = vpop.xlane.xlu0 %750
    %vm752 = vcmp.eq.f32.partialorder %v749, %v751
    %v753 = vsel %vm752, %v748, inf
    %754 = vmin.xlane.f32.xlu0 %v753
    %v755 = vpop.xlane.xlu0 %754
    %v756 = vcvt.f32.s32 %v755
    %v757 = vcvt.f32.s32 %v751
    %v758 = vshll.u32 %v757, 16
    %v759 = vadd.s32 %v758, %v756
    %v760 = vand.u32 %v403, 65535
    %v761 = vshra.s32 %v403, 16
    %v762 = vcvt.s32.f32 %v760
    %v763 = vcvt.s32.f32 %v761
    %764 = vmin.xlane.f32.xlu0 %v763
    %v765 = vpop.xlane.xlu0 %764
    %vm766 = vcmp.eq.f32.partialorder %v763, %v765
    %v767 = vsel %vm766, %v762, inf
    %768 = vmin.xlane.f32.xlu0 %v767
    %v769 = vpop.xlane.xlu0 %768
    %v770 = vcvt.f32.s32 %v769
    %v771 = vcvt.f32.s32 %v765
    %v772 = vshll.u32 %v771, 16
    %v773 = vadd.s32 %v772, %v770
    %v774 = vand.u32 %v404, 65535
    %v775 = vshra.s32 %v404, 16
    %v776 = vcvt.s32.f32 %v774
    %v777 = vcvt.s32.f32 %v775
    %778 = vmin.xlane.f32.xlu0 %v777
    %v779 = vpop.xlane.xlu0 %778
    %vm780 = vcmp.eq.f32.partialorder %v777, %v779
    %v781 = vsel %vm780, %v776, inf
    %782 = vmin.xlane.f32.xlu0 %v781
    %v783 = vpop.xlane.xlu0 %782
    %v784 = vcvt.f32.s32 %v783
    %v785 = vcvt.f32.s32 %v779
    %v786 = vshll.u32 %v785, 16
    %v787 = vadd.s32 %v786, %v784
    %v788 = vand.u32 %v405, 65535
    %v789 = vshra.s32 %v405, 16
    %v790 = vcvt.s32.f32 %v788
    %v791 = vcvt.s32.f32 %v789
    %792 = vmin.xlane.f32.xlu0 %v791
    %v793 = vpop.xlane.xlu0 %792
    %vm794 = vcmp.eq.f32.partialorder %v791, %v793
    %v795 = vsel %vm794, %v790, inf
    %796 = vmin.xlane.f32.xlu0 %v795
    %v797 = vpop.xlane.xlu0 %796
    %v798 = vcvt.f32.s32 %v797
    %v799 = vcvt.f32.s32 %v793
    %v800 = vshll.u32 %v799, 16
    %v801 = vadd.s32 %v800, %v798
    %v802 = vand.u32 %v406, 65535
    %v803 = vshra.s32 %v406, 16
    %v804 = vcvt.s32.f32 %v802
    %v805 = vcvt.s32.f32 %v803
    %806 = vmin.xlane.f32.xlu0 %v805
    %v807 = vpop.xlane.xlu0 %806
    %vm808 = vcmp.eq.f32.partialorder %v805, %v807
    %v809 = vsel %vm808, %v804, inf
    %810 = vmin.xlane.f32.xlu0 %v809
    %v811 = vpop.xlane.xlu0 %810
    %v812 = vcvt.f32.s32 %v811
    %v813 = vcvt.f32.s32 %v807
    %v814 = vshll.u32 %v813, 16
    %v815 = vadd.s32 %v814, %v812
    %v816 = vand.u32 %v407, 65535
    %v817 = vshra.s32 %v407, 16
    %v818 = vcvt.s32.f32 %v816
    %v819 = vcvt.s32.f32 %v817
    %820 = vmin.xlane.f32.xlu0 %v819
    %v821 = vpop.xlane.xlu0 %820
    %vm822 = vcmp.eq.f32.partialorder %v819, %v821
    %v823 = vsel %vm822, %v818, inf
    %824 = vmin.xlane.f32.xlu0 %v823
    %v825 = vpop.xlane.xlu0 %824
    %v826 = vcvt.f32.s32 %v825
    %v827 = vcvt.f32.s32 %v821
    %v828 = vshll.u32 %v827, 16
    %v829 = vadd.s32 %v828, %v826
    %v830 = vand.u32 %v408, 65535
    %v831 = vshra.s32 %v408, 16
    %v832 = vcvt.s32.f32 %v830
    %v833 = vcvt.s32.f32 %v831
    %834 = vmin.xlane.f32.xlu0 %v833
    %v835 = vpop.xlane.xlu0 %834
    %vm836 = vcmp.eq.f32.partialorder %v833, %v835
    %v837 = vsel %vm836, %v832, inf
    %838 = vmin.xlane.f32.xlu0 %v837
    %v839 = vpop.xlane.xlu0 %838
    %v840 = vcvt.f32.s32 %v839
    %v841 = vcvt.f32.s32 %v835
    %v842 = vshll.u32 %v841, 16
    %v843 = vadd.s32 %v842, %v840
    %v844 = vand.u32 %v409, 65535
    %v845 = vshra.s32 %v409, 16
    %v846 = vcvt.s32.f32 %v844
    %v847 = vcvt.s32.f32 %v845
    %848 = vmin.xlane.f32.xlu0 %v847
    %v849 = vpop.xlane.xlu0 %848
    %vm850 = vcmp.eq.f32.partialorder %v847, %v849
    %v851 = vsel %vm850, %v846, inf
    %852 = vmin.xlane.f32.xlu0 %v851
    %v853 = vpop.xlane.xlu0 %852
    %v854 = vcvt.f32.s32 %v853
    %v855 = vcvt.f32.s32 %v849
    %v856 = vshll.u32 %v855, 16
    %v857 = vadd.s32 %v856, %v854
    %vm858 = vcmp.eq.s32.totalorder %v345, %v423
    %vm859 = vcmp.eq.s32.totalorder %v345, %v437
    %vm860 = vcmp.eq.s32.totalorder %v345, %v451
    %vm861 = vcmp.eq.s32.totalorder %v345, %v465
    %vm862 = vcmp.eq.s32.totalorder %v345, %v479
    %vm863 = vcmp.eq.s32.totalorder %v345, %v493
    %vm864 = vcmp.eq.s32.totalorder %v345, %v507
    %vm865 = vcmp.eq.s32.totalorder %v345, %v521
    %vm866 = vcmp.eq.s32.totalorder %v345, %v535
    %vm867 = vcmp.eq.s32.totalorder %v345, %v549
    %vm868 = vcmp.eq.s32.totalorder %v345, %v563
    %vm869 = vcmp.eq.s32.totalorder %v345, %v577
    %vm870 = vcmp.eq.s32.totalorder %v345, %v591
    %vm871 = vcmp.eq.s32.totalorder %v345, %v605
    %vm872 = vcmp.eq.s32.totalorder %v345, %v619
    %vm873 = vcmp.eq.s32.totalorder %v345, %v633
    %vm874 = vcmp.eq.s32.totalorder %v345, %v647
    %vm875 = vcmp.eq.s32.totalorder %v345, %v661
    %vm876 = vcmp.eq.s32.totalorder %v345, %v675
    %vm877 = vcmp.eq.s32.totalorder %v345, %v689
    %vm878 = vcmp.eq.s32.totalorder %v345, %v703
    %vm879 = vcmp.eq.s32.totalorder %v345, %v717
    %vm880 = vcmp.eq.s32.totalorder %v345, %v731
    %vm881 = vcmp.eq.s32.totalorder %v345, %v745
    %vm882 = vcmp.eq.s32.totalorder %v345, %v759
    %vm883 = vcmp.eq.s32.totalorder %v345, %v773
    %vm884 = vcmp.eq.s32.totalorder %v345, %v787
    %vm885 = vcmp.eq.s32.totalorder %v345, %v801
    %vm886 = vcmp.eq.s32.totalorder %v345, %v815
    %vm887 = vcmp.eq.s32.totalorder %v345, %v829
    %vm888 = vcmp.eq.s32.totalorder %v345, %v843
    %vm889 = vcmp.eq.s32.totalorder %v345, %v857
    %v890 = vsel %vm858, 1, 0
    %v891 = vsel %vm859, 1, 0
    %v892 = vsel %vm860, 1, 0
    %v893 = vsel %vm861, 1, 0
    %v894 = vsel %vm862, 1, 0
    %v895 = vsel %vm863, 1, 0
    %v896 = vsel %vm864, 1, 0
    %v897 = vsel %vm865, 1, 0
    %v898 = vsel %vm866, 1, 0
    %v899 = vsel %vm867, 1, 0
    %v900 = vsel %vm868, 1, 0
    %v901 = vsel %vm869, 1, 0
    %v902 = vsel %vm870, 1, 0
    %v903 = vsel %vm871, 1, 0
    %v904 = vsel %vm872, 1, 0
    %v905 = vsel %vm873, 1, 0
    %v906 = vsel %vm874, 1, 0
    %v907 = vsel %vm875, 1, 0
    %v908 = vsel %vm876, 1, 0
    %v909 = vsel %vm877, 1, 0
    %v910 = vsel %vm878, 1, 0
    %v911 = vsel %vm879, 1, 0
    %v912 = vsel %vm880, 1, 0
    %v913 = vsel %vm881, 1, 0
    %v914 = vsel %vm882, 1, 0
    %v915 = vsel %vm883, 1, 0
    %v916 = vsel %vm884, 1, 0
    %v917 = vsel %vm885, 1, 0
    %v918 = vsel %vm886, 1, 0
    %v919 = vsel %vm887, 1, 0
    %v920 = vsel %vm888, 1, 0
    %v921 = vsel %vm889, 1, 0
    %v922 = vcvt.s32.f32 %v890
    %v923 = vcvt.s32.f32 %v891
    %v924 = vcvt.s32.f32 %v892
    %v925 = vcvt.s32.f32 %v893
    %v926 = vcvt.s32.f32 %v894
    %v927 = vcvt.s32.f32 %v895
    %v928 = vcvt.s32.f32 %v896
    %v929 = vcvt.s32.f32 %v897
    %v930 = vcvt.s32.f32 %v898
    %v931 = vcvt.s32.f32 %v899
    %v932 = vcvt.s32.f32 %v900
    %v933 = vcvt.s32.f32 %v901
    %v934 = vcvt.s32.f32 %v902
    %v935 = vcvt.s32.f32 %v903
    %v936 = vcvt.s32.f32 %v904
    %v937 = vcvt.s32.f32 %v905
    %v938 = vcvt.s32.f32 %v906
    %v939 = vcvt.s32.f32 %v907
    %v940 = vcvt.s32.f32 %v908
    %v941 = vcvt.s32.f32 %v909
    %v942 = vcvt.s32.f32 %v910
    %v943 = vcvt.s32.f32 %v911
    %v944 = vcvt.s32.f32 %v912
    %v945 = vcvt.s32.f32 %v913
    %v946 = vcvt.s32.f32 %v914
    %v947 = vcvt.s32.f32 %v915
    %v948 = vcvt.s32.f32 %v916
    %v949 = vcvt.s32.f32 %v917
    %v950 = vcvt.s32.f32 %v918
    %v951 = vcvt.s32.f32 %v919
    %v952 = vcvt.s32.f32 %v920
    %v953 = vcvt.s32.f32 %v921
    %954 = vmatpush.msra.mxu0 %v98
    %955 = vmatpush.msra.mxu0 %v97
    %956 = vmatpush.msra.mxu0 %v96
    %957 = vmatpush.msra.mxu0 %v95
    %958 = vmatpush.msra.mxu0 %v94
    %959 = vmatpush.msra.mxu0 %v93
    %960 = vmatpush.msra.mxu0 %v92
    %961 = vmatpush.msra.mxu0 %v91
    %962 = vmatpush.msra.mxu0 %v90
    %963 = vmatpush.msra.mxu0 %v89
    %964 = vmatpush.msra.mxu0 %v88
    %965 = vmatpush.msra.mxu0 %v87
    %966 = vmatpush.msra.mxu0 %v86
    %967 = vmatpush.msra.mxu0 %v85
    %968 = vmatpush.msra.mxu0 %v84
    %969 = vmatpush.msra.mxu0 %v83
    %970 = vmatmul.f32.gmra.mxu0 %v922
    %v971 = vpop.f32.mrf.mxu0
    %v972 = vadd.f32 0.0, %v971
    %973 = vmatmul.f32.gmra.mxu0 %v923
    %v974 = vpop.f32.mrf.mxu0
    %v975 = vadd.f32 0.0, %v974
    %976 = vmatmul.f32.gmra.mxu0 %v924
    %v977 = vpop.f32.mrf.mxu0
    %v978 = vadd.f32 0.0, %v977
    %979 = vmatmul.f32.gmra.mxu0 %v925
    %v980 = vpop.f32.mrf.mxu0
    %v981 = vadd.f32 0.0, %v980
    %982 = vmatmul.f32.gmra.mxu0 %v926
    %v983 = vpop.f32.mrf.mxu0
    %v984 = vadd.f32 0.0, %v983
    %985 = vmatmul.f32.gmra.mxu0 %v927
    %v986 = vpop.f32.mrf.mxu0
    %v987 = vadd.f32 0.0, %v986
    %988 = vmatmul.f32.gmra.mxu0 %v928
    %v989 = vpop.f32.mrf.mxu0
    %v990 = vadd.f32 0.0, %v989
    %991 = vmatmul.f32.gmra.mxu0 %v929
    %v992 = vpop.f32.mrf.mxu0
    %v993 = vadd.f32 0.0, %v992
    %994 = vmatmul.f32.gmra.mxu0 %v930
    %v995 = vpop.f32.mrf.mxu0
    %v996 = vadd.f32 0.0, %v995
    %997 = vmatmul.f32.gmra.mxu0 %v931
    %v998 = vpop.f32.mrf.mxu0
    %v999 = vadd.f32 0.0, %v998
    %1000 = vmatmul.f32.gmra.mxu0 %v932
    %v1001 = vpop.f32.mrf.mxu0
    %v1002 = vadd.f32 0.0, %v1001
    %1003 = vmatmul.f32.gmra.mxu0 %v933
    %v1004 = vpop.f32.mrf.mxu0
    %v1005 = vadd.f32 0.0, %v1004
    %1006 = vmatmul.f32.gmra.mxu0 %v934
    %v1007 = vpop.f32.mrf.mxu0
    %v1008 = vadd.f32 0.0, %v1007
    %1009 = vmatmul.f32.gmra.mxu0 %v935
    %v1010 = vpop.f32.mrf.mxu0
    %v1011 = vadd.f32 0.0, %v1010
    %1012 = vmatmul.f32.gmra.mxu0 %v936
    %v1013 = vpop.f32.mrf.mxu0
    %v1014 = vadd.f32 0.0, %v1013
    %1015 = vmatmul.f32.gmra.mxu0 %v937
    %v1016 = vpop.f32.mrf.mxu0
    %v1017 = vadd.f32 0.0, %v1016
    %1018 = vmatmul.f32.gmra.mxu0 %v938
    %v1019 = vpop.f32.mrf.mxu0
    %v1020 = vadd.f32 0.0, %v1019
    %1021 = vmatmul.f32.gmra.mxu0 %v939
    %v1022 = vpop.f32.mrf.mxu0
    %v1023 = vadd.f32 0.0, %v1022
    %1024 = vmatmul.f32.gmra.mxu0 %v940
    %v1025 = vpop.f32.mrf.mxu0
    %v1026 = vadd.f32 0.0, %v1025
    %1027 = vmatmul.f32.gmra.mxu0 %v941
    %v1028 = vpop.f32.mrf.mxu0
    %v1029 = vadd.f32 0.0, %v1028
    %1030 = vmatmul.f32.gmra.mxu0 %v942
    %v1031 = vpop.f32.mrf.mxu0
    %v1032 = vadd.f32 0.0, %v1031
    %1033 = vmatmul.f32.gmra.mxu0 %v943
    %v1034 = vpop.f32.mrf.mxu0
    %v1035 = vadd.f32 0.0, %v1034
    %1036 = vmatmul.f32.gmra.mxu0 %v944
    %v1037 = vpop.f32.mrf.mxu0
    %v1038 = vadd.f32 0.0, %v1037
    %1039 = vmatmul.f32.gmra.mxu0 %v945
    %v1040 = vpop.f32.mrf.mxu0
    %v1041 = vadd.f32 0.0, %v1040
    %1042 = vmatmul.f32.gmra.mxu0 %v946
    %v1043 = vpop.f32.mrf.mxu0
    %v1044 = vadd.f32 0.0, %v1043
    %1045 = vmatmul.f32.gmra.mxu0 %v947
    %v1046 = vpop.f32.mrf.mxu0
    %v1047 = vadd.f32 0.0, %v1046
    %1048 = vmatmul.f32.gmra.mxu0 %v948
    %v1049 = vpop.f32.mrf.mxu0
    %v1050 = vadd.f32 0.0, %v1049
    %1051 = vmatmul.f32.gmra.mxu0 %v949
    %v1052 = vpop.f32.mrf.mxu0
    %v1053 = vadd.f32 0.0, %v1052
    %1054 = vmatmul.f32.gmra.mxu0 %v950
    %v1055 = vpop.f32.mrf.mxu0
    %v1056 = vadd.f32 0.0, %v1055
    %1057 = vmatmul.f32.gmra.mxu0 %v951
    %v1058 = vpop.f32.mrf.mxu0
    %v1059 = vadd.f32 0.0, %v1058
    %1060 = vmatmul.f32.gmra.mxu0 %v952
    %v1061 = vpop.f32.mrf.mxu0
    %v1062 = vadd.f32 0.0, %v1061
    %1063 = vmatmul.f32.gmra.mxu0 %v953
    %v1064 = vpop.f32.mrf.mxu0
    %v1065 = vadd.f32 0.0, %v1064
    %1066 = vdwg.mxu0
    %1067 = vst [vmem:[#allocation7] sm:$0xff] %v972
    %1068 = vst [vmem:[#allocation7 + $0x8] sm:$0xff] %v975
    %1069 = vst [vmem:[#allocation7 + $0x10] sm:$0xff] %v978
    %1070 = vst [vmem:[#allocation7 + $0x18] sm:$0xff] %v981
    %1071 = vst [vmem:[#allocation7 + $0x20] sm:$0xff] %v984
    %1072 = vst [vmem:[#allocation7 + $0x28] sm:$0xff] %v987
    %1073 = vst [vmem:[#allocation7 + $0x30] sm:$0xff] %v990
    %1074 = vst [vmem:[#allocation7 + $0x38] sm:$0xff] %v993
    %1075 = vst [vmem:[#allocation7 + $0x40] sm:$0xff] %v996
    %1076 = vst [vmem:[#allocation7 + $0x48] sm:$0xff] %v999
    %1077 = vst [vmem:[#allocation7 + $0x50] sm:$0xff] %v1002
    %1078 = vst [vmem:[#allocation7 + $0x58] sm:$0xff] %v1005
    %1079 = vst [vmem:[#allocation7 + $0x60] sm:$0xff] %v1008
    %1080 = vst [vmem:[#allocation7 + $0x68] sm:$0xff] %v1011
    %1081 = vst [vmem:[#allocation7 + $0x70] sm:$0xff] %v1014
    %1082 = vst [vmem:[#allocation7 + $0x78] sm:$0xff] %v1017
    %1083 = vst [vmem:[#allocation7 + $0x80] sm:$0xff] %v1020
    %1084 = vst [vmem:[#allocation7 + $0x88] sm:$0xff] %v1023
    %1085 = vst [vmem:[#allocation7 + $0x90] sm:$0xff] %v1026
    %1086 = vst [vmem:[#allocation7 + $0x98] sm:$0xff] %v1029
    %1087 = vst [vmem:[#allocation7 + $0xa0] sm:$0xff] %v1032
    %1088 = vst [vmem:[#allocation7 + $0xa8] sm:$0xff] %v1035
    %1089 = vst [vmem:[#allocation7 + $0xb0] sm:$0xff] %v1038
    %1090 = vst [vmem:[#allocation7 + $0xb8] sm:$0xff] %v1041
    %1091 = vst [vmem:[#allocation7 + $0xc0] sm:$0xff] %v1044
    %1092 = vst [vmem:[#allocation7 + $0xc8] sm:$0xff] %v1047
    %1093 = vst [vmem:[#allocation7 + $0xd0] sm:$0xff] %v1050
    %1094 = vst [vmem:[#allocation7 + $0xd8] sm:$0xff] %v1053
    %1095 = vst [vmem:[#allocation7 + $0xe0] sm:$0xff] %v1056
    %1096 = vst [vmem:[#allocation7 + $0xe8] sm:$0xff] %v1059
    %1097 = vst [vmem:[#allocation7 + $0xf0] sm:$0xff] %v1062
    %1098 = vst [vmem:[#allocation7 + $0xf8] sm:$0xff] %v1065
    %v1099 = vsub.f32 %v972, %v51
    %v1100 = vsub.f32 %v975, %v52
    %v1101 = vsub.f32 %v978, %v53
    %v1102 = vsub.f32 %v981, %v54
    %v1103 = vsub.f32 %v984, %v55
    %v1104 = vsub.f32 %v987, %v56
    %v1105 = vsub.f32 %v990, %v57
    %v1106 = vsub.f32 %v993, %v58
    %v1107 = vsub.f32 %v996, %v59
    %v1108 = vsub.f32 %v999, %v60
    %v1109 = vsub.f32 %v1002, %v61
    %v1110 = vsub.f32 %v1005, %v62
    %v1111 = vsub.f32 %v1008, %v63
    %v1112 = vsub.f32 %v1011, %v64
    %v1113 = vsub.f32 %v1014, %v65
    %v1114 = vsub.f32 %v1017, %v66
    %v1115 = vsub.f32 %v1020, %v67
    %v1116 = vsub.f32 %v1023, %v68
    %v1117 = vsub.f32 %v1026, %v69
    %v1118 = vsub.f32 %v1029, %v70
    %v1119 = vsub.f32 %v1032, %v71
    %v1120 = vsub.f32 %v1035, %v72
    %v1121 = vsub.f32 %v1038, %v73
    %v1122 = vsub.f32 %v1041, %v74
    %v1123 = vsub.f32 %v1044, %v75
    %v1124 = vsub.f32 %v1047, %v76
    %v1125 = vsub.f32 %v1050, %v77
    %v1126 = vsub.f32 %v1053, %v78
    %v1127 = vsub.f32 %v1056, %v79
    %v1128 = vsub.f32 %v1059, %v80
    %v1129 = vsub.f32 %v1062, %v81
    %v1130 = vsub.f32 %v1065, %v82
    %v1131 = vlaneseq
    %v1132 = vshrl.u32 %v1131, 7
    %v1133 = vadd.s32 %v1132, 8
    %v1134 = vadd.s32 %v1132, 16
    %v1135 = vadd.s32 %v1132, 24
    %v1136 = vadd.s32 %v1132, 32
    %v1137 = vadd.s32 %v1132, 40
    %v1138 = vadd.s32 %v1132, 48
    %v1139 = vadd.s32 %v1132, 56
    %v1140 = vadd.s32 %v1132, 64
    %v1141 = vadd.s32 %v1132, 72
    %v1142 = vadd.s32 %v1132, 80
    %v1143 = vadd.s32 %v1132, 88
    %v1144 = vadd.s32 %v1132, 96
    %v1145 = vadd.s32 %v1132, 104
    %v1146 = vadd.s32 %v1132, 112
    %v1147 = vadd.s32 %v1132, 120
    %v1148 = vadd.s32 %v1132, 128
    %v1149 = vadd.s32 %v1132, 136
    %v1150 = vadd.s32 %v1132, 144
    %v1151 = vadd.s32 %v1132, 152
    %v1152 = vadd.s32 %v1132, 160
    %v1153 = vadd.s32 %v1132, 168
    %v1154 = vadd.s32 %v1132, 176
    %v1155 = vadd.s32 %v1132, 184
    %v1156 = vadd.s32 %v1132, 192
    %v1157 = vadd.s32 %v1132, 200
    %v1158 = vadd.s32 %v1132, 208
    %v1159 = vadd.s32 %v1132, 216
    %v1160 = vadd.s32 %v1132, 224
    %v1161 = vadd.s32 %v1132, 232
    %v1162 = vadd.s32 %v1132, 240
    %v1163 = vadd.s32 %v1132, 248
    %s1164 = smul.u32 0, 256
    %v1165 = vstv %s1164
    %v1166 = vadd.s32 %v1165, %v1132
    %v1167 = vadd.s32 %v1165, %v1133
    %v1168 = vadd.s32 %v1165, %v1134
    %v1169 = vadd.s32 %v1165, %v1135
    %v1170 = vadd.s32 %v1165, %v1136
    %v1171 = vadd.s32 %v1165, %v1137
    %v1172 = vadd.s32 %v1165, %v1138
    %v1173 = vadd.s32 %v1165, %v1139
    %v1174 = vadd.s32 %v1165, %v1140
    %v1175 = vadd.s32 %v1165, %v1141
    %v1176 = vadd.s32 %v1165, %v1142
    %v1177 = vadd.s32 %v1165, %v1143
    %v1178 = vadd.s32 %v1165, %v1144
    %v1179 = vadd.s32 %v1165, %v1145
    %v1180 = vadd.s32 %v1165, %v1146
    %v1181 = vadd.s32 %v1165, %v1147
    %v1182 = vadd.s32 %v1165, %v1148
    %v1183 = vadd.s32 %v1165, %v1149
    %v1184 = vadd.s32 %v1165, %v1150
    %v1185 = vadd.s32 %v1165, %v1151
    %v1186 = vadd.s32 %v1165, %v1152
    %v1187 = vadd.s32 %v1165, %v1153
    %v1188 = vadd.s32 %v1165, %v1154
    %v1189 = vadd.s32 %v1165, %v1155
    %v1190 = vadd.s32 %v1165, %v1156
    %v1191 = vadd.s32 %v1165, %v1157
    %v1192 = vadd.s32 %v1165, %v1158
    %v1193 = vadd.s32 %v1165, %v1159
    %v1194 = vadd.s32 %v1165, %v1160
    %v1195 = vadd.s32 %v1165, %v1161
    %v1196 = vadd.s32 %v1165, %v1162
    %v1197 = vadd.s32 %v1165, %v1163
    %vm1198 = vcmp.lt.s32.totalorder %v1166, 16
    %vm1199 = vcmp.lt.s32.totalorder %v1167, 16
    %vm1200 = vcmp.lt.s32.totalorder %v1168, 16
    %vm1201 = vcmp.lt.s32.totalorder %v1169, 16
    %vm1202 = vcmp.lt.s32.totalorder %v1170, 16
    %vm1203 = vcmp.lt.s32.totalorder %v1171, 16
    %vm1204 = vcmp.lt.s32.totalorder %v1172, 16
    %vm1205 = vcmp.lt.s32.totalorder %v1173, 16
    %vm1206 = vcmp.lt.s32.totalorder %v1174, 16
    %vm1207 = vcmp.lt.s32.totalorder %v1175, 16
    %vm1208 = vcmp.lt.s32.totalorder %v1176, 16
    %vm1209 = vcmp.lt.s32.totalorder %v1177, 16
    %vm1210 = vcmp.lt.s32.totalorder %v1178, 16
    %vm1211 = vcmp.lt.s32.totalorder %v1179, 16
    %vm1212 = vcmp.lt.s32.totalorder %v1180, 16
    %vm1213 = vcmp.lt.s32.totalorder %v1181, 16
    %vm1214 = vcmp.lt.s32.totalorder %v1182, 16
    %vm1215 = vcmp.lt.s32.totalorder %v1183, 16
    %vm1216 = vcmp.lt.s32.totalorder %v1184, 16
    %vm1217 = vcmp.lt.s32.totalorder %v1185, 16
    %vm1218 = vcmp.lt.s32.totalorder %v1186, 16
    %vm1219 = vcmp.lt.s32.totalorder %v1187, 16
    %vm1220 = vcmp.lt.s32.totalorder %v1188, 16
    %vm1221 = vcmp.lt.s32.totalorder %v1189, 16
    %vm1222 = vcmp.lt.s32.totalorder %v1190, 16
    %vm1223 = vcmp.lt.s32.totalorder %v1191, 16
    %vm1224 = vcmp.lt.s32.totalorder %v1192, 16
    %vm1225 = vcmp.lt.s32.totalorder %v1193, 16
    %vm1226 = vcmp.lt.s32.totalorder %v1194, 16
    %vm1227 = vcmp.lt.s32.totalorder %v1195, 16
    %vm1228 = vcmp.lt.s32.totalorder %v1196, 16
    %vm1229 = vcmp.lt.s32.totalorder %v1197, 16
    %v1230 = vsel %vm1198, 1, 0
    %v1231 = vsel %vm1199, 1, 0
    %v1232 = vsel %vm1200, 1, 0
    %v1233 = vsel %vm1201, 1, 0
    %v1234 = vsel %vm1202, 1, 0
    %v1235 = vsel %vm1203, 1, 0
    %v1236 = vsel %vm1204, 1, 0
    %v1237 = vsel %vm1205, 1, 0
    %v1238 = vsel %vm1206, 1, 0
    %v1239 = vsel %vm1207, 1, 0
    %v1240 = vsel %vm1208, 1, 0
    %v1241 = vsel %vm1209, 1, 0
    %v1242 = vsel %vm1210, 1, 0
    %v1243 = vsel %vm1211, 1, 0
    %v1244 = vsel %vm1212, 1, 0
    %v1245 = vsel %vm1213, 1, 0
    %v1246 = vsel %vm1214, 1, 0
    %v1247 = vsel %vm1215, 1, 0
    %v1248 = vsel %vm1216, 1, 0
    %v1249 = vsel %vm1217, 1, 0
    %v1250 = vsel %vm1218, 1, 0
    %v1251 = vsel %vm1219, 1, 0
    %v1252 = vsel %vm1220, 1, 0
    %v1253 = vsel %vm1221, 1, 0
    %v1254 = vsel %vm1222, 1, 0
    %v1255 = vsel %vm1223, 1, 0
    %v1256 = vsel %vm1224, 1, 0
    %v1257 = vsel %vm1225, 1, 0
    %v1258 = vsel %vm1226, 1, 0
    %v1259 = vsel %vm1227, 1, 0
    %v1260 = vsel %vm1228, 1, 0
    %v1261 = vsel %vm1229, 1, 0
    %v1262 = vcvt.s32.f32 %v1230
    %v1263 = vcvt.s32.f32 %v1231
    %v1264 = vcvt.s32.f32 %v1232
    %v1265 = vcvt.s32.f32 %v1233
    %v1266 = vcvt.s32.f32 %v1234
    %v1267 = vcvt.s32.f32 %v1235
    %v1268 = vcvt.s32.f32 %v1236
    %v1269 = vcvt.s32.f32 %v1237
    %v1270 = vcvt.s32.f32 %v1238
    %v1271 = vcvt.s32.f32 %v1239
    %v1272 = vcvt.s32.f32 %v1240
    %v1273 = vcvt.s32.f32 %v1241
    %v1274 = vcvt.s32.f32 %v1242
    %v1275 = vcvt.s32.f32 %v1243
    %v1276 = vcvt.s32.f32 %v1244
    %v1277 = vcvt.s32.f32 %v1245
    %v1278 = vcvt.s32.f32 %v1246
    %v1279 = vcvt.s32.f32 %v1247
    %v1280 = vcvt.s32.f32 %v1248
    %v1281 = vcvt.s32.f32 %v1249
    %v1282 = vcvt.s32.f32 %v1250
    %v1283 = vcvt.s32.f32 %v1251
    %v1284 = vcvt.s32.f32 %v1252
    %v1285 = vcvt.s32.f32 %v1253
    %v1286 = vcvt.s32.f32 %v1254
    %v1287 = vcvt.s32.f32 %v1255
    %v1288 = vcvt.s32.f32 %v1256
    %v1289 = vcvt.s32.f32 %v1257
    %v1290 = vcvt.s32.f32 %v1258
    %v1291 = vcvt.s32.f32 %v1259
    %v1292 = vcvt.s32.f32 %v1260
    %v1293 = vcvt.s32.f32 %v1261
    %v1294 = vmul.f32 %v922, %v1262
    %v1295 = vmul.f32 %v923, %v1263
    %v1296 = vmul.f32 %v924, %v1264
    %v1297 = vmul.f32 %v925, %v1265
    %v1298 = vmul.f32 %v926, %v1266
    %v1299 = vmul.f32 %v927, %v1267
    %v1300 = vmul.f32 %v928, %v1268
    %v1301 = vmul.f32 %v929, %v1269
    %v1302 = vmul.f32 %v930, %v1270
    %v1303 = vmul.f32 %v931, %v1271
    %v1304 = vmul.f32 %v932, %v1272
    %v1305 = vmul.f32 %v933, %v1273
    %v1306 = vmul.f32 %v934, %v1274
    %v1307 = vmul.f32 %v935, %v1275
    %v1308 = vmul.f32 %v936, %v1276
    %v1309 = vmul.f32 %v937, %v1277
    %v1310 = vmul.f32 %v938, %v1278
    %v1311 = vmul.f32 %v939, %v1279
    %v1312 = vmul.f32 %v940, %v1280
    %v1313 = vmul.f32 %v941, %v1281
    %v1314 = vmul.f32 %v942, %v1282
    %v1315 = vmul.f32 %v943, %v1283
    %v1316 = vmul.f32 %v944, %v1284
    %v1317 = vmul.f32 %v945, %v1285
    %v1318 = vmul.f32 %v946, %v1286
    %v1319 = vmul.f32 %v947, %v1287
    %v1320 = vmul.f32 %v948, %v1288
    %v1321 = vmul.f32 %v949, %v1289
    %v1322 = vmul.f32 %v950, %v1290
    %v1323 = vmul.f32 %v951, %v1291
    %v1324 = vmul.f32 %v952, %v1292
    %v1325 = vmul.f32 %v953, %v1293
    %v1326 = vmul.f32 %v1099, %v1262
    %v1327 = vmul.f32 %v1100, %v1263
    %v1328 = vmul.f32 %v1101, %v1264
    %v1329 = vmul.f32 %v1102, %v1265
    %v1330 = vmul.f32 %v1103, %v1266
    %v1331 = vmul.f32 %v1104, %v1267
    %v1332 = vmul.f32 %v1105, %v1268
    %v1333 = vmul.f32 %v1106, %v1269
    %v1334 = vmul.f32 %v1107, %v1270
    %v1335 = vmul.f32 %v1108, %v1271
    %v1336 = vmul.f32 %v1109, %v1272
    %v1337 = vmul.f32 %v1110, %v1273
    %v1338 = vmul.f32 %v1111, %v1274
    %v1339 = vmul.f32 %v1112, %v1275
    %v1340 = vmul.f32 %v1113, %v1276
    %v1341 = vmul.f32 %v1114, %v1277
    %v1342 = vmul.f32 %v1115, %v1278
    %v1343 = vmul.f32 %v1116, %v1279
    %v1344 = vmul.f32 %v1117, %v1280
    %v1345 = vmul.f32 %v1118, %v1281
    %v1346 = vmul.f32 %v1119, %v1282
    %v1347 = vmul.f32 %v1120, %v1283
    %v1348 = vmul.f32 %v1121, %v1284
    %v1349 = vmul.f32 %v1122, %v1285
    %v1350 = vmul.f32 %v1123, %v1286
    %v1351 = vmul.f32 %v1124, %v1287
    %v1352 = vmul.f32 %v1125, %v1288
    %v1353 = vmul.f32 %v1126, %v1289
    %v1354 = vmul.f32 %v1127, %v1290
    %v1355 = vmul.f32 %v1128, %v1291
    %v1356 = vmul.f32 %v1129, %v1292
    %v1357 = vmul.f32 %v1130, %v1293
    %v1358 = vadd.f32 %v1294, %v1295
    %v1359 = vadd.f32 %v1358, %v1296
    %v1360 = vadd.f32 %v1359, %v1297
    %v1361 = vadd.f32 %v1360, %v1298
    %v1362 = vadd.f32 %v1361, %v1299
    %v1363 = vadd.f32 %v1362, %v1300
    %v1364 = vadd.f32 %v1363, %v1301
    %v1365 = vadd.f32 %v1364, %v1302
    %v1366 = vadd.f32 %v1365, %v1303
    %v1367 = vadd.f32 %v1366, %v1304
    %v1368 = vadd.f32 %v1367, %v1305
    %v1369 = vadd.f32 %v1368, %v1306
    %v1370 = vadd.f32 %v1369, %v1307
    %v1371 = vadd.f32 %v1370, %v1308
    %v1372 = vadd.f32 %v1371, %v1309
    %v1373 = vadd.f32 %v1372, %v1310
    %v1374 = vadd.f32 %v1373, %v1311
    %v1375 = vadd.f32 %v1374, %v1312
    %v1376 = vadd.f32 %v1375, %v1313
    %v1377 = vadd.f32 %v1376, %v1314
    %v1378 = vadd.f32 %v1377, %v1315
    %v1379 = vadd.f32 %v1378, %v1316
    %v1380 = vadd.f32 %v1379, %v1317
    %v1381 = vadd.f32 %v1380, %v1318
    %v1382 = vadd.f32 %v1381, %v1319
    %v1383 = vadd.f32 %v1382, %v1320
    %v1384 = vadd.f32 %v1383, %v1321
    %v1385 = vadd.f32 %v1384, %v1322
    %v1386 = vadd.f32 %v1385, %v1323
    %v1387 = vadd.f32 %v1386, %v1324
    %v1388 = vadd.f32 %v1387, %v1325
    %v1389 = vrot.slane %v1388, 4
    %v1390 = vadd.f32 %v1388, %v1389
    %v1391 = vrot.slane %v1390, 2
    %v1392 = vadd.f32 %v1390, %v1391
    %v1393 = vrot.slane %v1392, 1
    %v1394 = vadd.f32 %v1392, %v1393
    %1395 = vst [vmem:[#allocation8] sm:$0x1] %v1394
    %v1396 = vmul.f32 %v1326, %v1326
    %v1397 = vmul.f32 %v1327, %v1327
    %v1398 = vmul.f32 %v1328, %v1328
    %v1399 = vmul.f32 %v1329, %v1329
    %v1400 = vmul.f32 %v1330, %v1330
    %v1401 = vmul.f32 %v1331, %v1331
    %v1402 = vmul.f32 %v1332, %v1332
    %v1403 = vmul.f32 %v1333, %v1333
    %v1404 = vmul.f32 %v1334, %v1334
    %v1405 = vmul.f32 %v1335, %v1335
    %v1406 = vmul.f32 %v1336, %v1336
    %v1407 = vmul.f32 %v1337, %v1337
    %v1408 = vmul.f32 %v1338, %v1338
    %v1409 = vmul.f32 %v1339, %v1339
    %v1410 = vmul.f32 %v1340, %v1340
    %v1411 = vmul.f32 %v1341, %v1341
    %v1412 = vmul.f32 %v1342, %v1342
    %v1413 = vmul.f32 %v1343, %v1343
    %v1414 = vmul.f32 %v1344, %v1344
    %v1415 = vmul.f32 %v1345, %v1345
    %v1416 = vmul.f32 %v1346, %v1346
    %v1417 = vmul.f32 %v1347, %v1347
    %v1418 = vmul.f32 %v1348, %v1348
    %v1419 = vmul.f32 %v1349, %v1349
    %v1420 = vmul.f32 %v1350, %v1350
    %v1421 = vmul.f32 %v1351, %v1351
    %v1422 = vmul.f32 %v1352, %v1352
    %v1423 = vmul.f32 %v1353, %v1353
    %v1424 = vmul.f32 %v1354, %v1354
    %v1425 = vmul.f32 %v1355, %v1355
    %v1426 = vmul.f32 %v1356, %v1356
    %v1427 = vmul.f32 %v1357, %v1357
    %v1428 = vadd.f32 %v1396, %v1397
    %v1429 = vadd.f32 %v1428, %v1398
    %v1430 = vadd.f32 %v1429, %v1399
    %v1431 = vadd.f32 %v1430, %v1400
    %v1432 = vadd.f32 %v1431, %v1401
    %v1433 = vadd.f32 %v1432, %v1402
    %v1434 = vadd.f32 %v1433, %v1403
    %v1435 = vadd.f32 %v1434, %v1404
    %v1436 = vadd.f32 %v1435, %v1405
    %v1437 = vadd.f32 %v1436, %v1406
    %v1438 = vadd.f32 %v1437, %v1407
    %v1439 = vadd.f32 %v1438, %v1408
    %v1440 = vadd.f32 %v1439, %v1409
    %v1441 = vadd.f32 %v1440, %v1410
    %v1442 = vadd.f32 %v1441, %v1411
    %v1443 = vadd.f32 %v1442, %v1412
    %v1444 = vadd.f32 %v1443, %v1413
    %v1445 = vadd.f32 %v1444, %v1414
    %v1446 = vadd.f32 %v1445, %v1415
    %v1447 = vadd.f32 %v1446, %v1416
    %v1448 = vadd.f32 %v1447, %v1417
    %v1449 = vadd.f32 %v1448, %v1418
    %v1450 = vadd.f32 %v1449, %v1419
    %v1451 = vadd.f32 %v1450, %v1420
    %v1452 = vadd.f32 %v1451, %v1421
    %v1453 = vadd.f32 %v1452, %v1422
    %v1454 = vadd.f32 %v1453, %v1423
    %v1455 = vadd.f32 %v1454, %v1424
    %v1456 = vadd.f32 %v1455, %v1425
    %v1457 = vadd.f32 %v1456, %v1426
    %v1458 = vadd.f32 %v1457, %v1427
    %1459 = vadd.xlane.f32.xlu0 %v1458
    %v1460 = vpop.xlane.xlu0 %1459
    %v1461 = vrot.slane %v1460, 4
    %v1462 = vadd.f32 %v1460, %v1461
    %v1463 = vrot.slane %v1462, 2
    %v1464 = vadd.f32 %v1462, %v1463
    %v1465 = vrot.slane %v1464, 1
    %v1466 = vadd.f32 %v1464, %v1465
    %s1467 = vtos %v1466
    %v1468 = vstv %s1467
    %1469 = vst [vmem:[#allocation10] sm:$0x1] %v1468
    // Predicated region
    $region22: #{tpu_custom_call.1} parent=1 // pred_check
      _
    $region23: #{tpu_custom_call.1} parent=1 // pred_check_branch
      %1471 = sbr.rel (0) target = $region25
    $region24: #{tpu_custom_call.1} parent=1 // pred_region
      %1473 = vsyncadd [#allocation4], 0
      %s1474 = sshll.u32 [#allocation7], 4
      %s1475 = int_to_ptr.vmem [resolvable:$true] %s1474
      %s1476 = sshll.u32 %s3, 4
      %s1477 = int_to_ptr.hbm [resolvable:$true] %s1476
      %1482 = dma.vmem_to_hbm [thread:$0]  %s1475, 4096, %s1477, [#allocation4], 128, 128, 8
    $region25: #{tpu_custom_call.1} parent=1 // pred_fallthru
      _
    // Predicated region
    $region26: #{tpu_custom_call.1} parent=1 // pred_check
      _
    $region27: #{tpu_custom_call.1} parent=1 // pred_check_branch
      %1484 = sbr.rel (0) target = $region29
    $region28: #{tpu_custom_call.1} parent=1 // pred_region
      %1486 = vsyncadd [#allocation9], 0
      %s1488 = sshll.u32 [#allocation8], 4
      %s1489 = int_to_ptr.vmem [resolvable:$true] %s1488
      %s1490 = sshll.u32 %s4, 4
      %s1491 = int_to_ptr.hbm [resolvable:$true] %s1490
      %1493 = dma.vmem_to_hbm [thread:$0]  %s1489, 16, %s1491, [#allocation9]
    $region29: #{tpu_custom_call.1} parent=1 // pred_fallthru
      _
    // Predicated region
    $region30: #{tpu_custom_call.1} parent=1 // pred_check
      _
    $region31: #{tpu_custom_call.1} parent=1 // pred_check_branch
      %1495 = sbr.rel (0) target = $region33
    $region32: #{tpu_custom_call.1} parent=1 // pred_region
      %1497 = vsyncadd [#allocation9], 0
      %s1499 = sshll.u32 [#allocation10], 4
      %s1500 = int_to_ptr.vmem [resolvable:$true] %s1499
      %s1501 = sshll.u32 %s5, 4
      %s1502 = int_to_ptr.hbm [resolvable:$true] %s1501
      %1504 = dma.vmem_to_hbm [thread:$0]  %s1500, 16, %s1502, [#allocation9]
    $region33: #{tpu_custom_call.1} parent=1 // pred_fallthru
      _
    // Predicated region
    $region34: #{tpu_custom_call.1} parent=1 // pred_check
      _
    $region35: #{tpu_custom_call.1} parent=1 // pred_check_branch
      %1506 = sbr.rel (0) target = $region37
    $region36: #{tpu_custom_call.1} parent=1 // pred_region
      %1508 = dma.done [#allocation4], 4096
    $region37: #{tpu_custom_call.1} parent=1 // pred_fallthru
      _
    // Predicated region
    $region38: #{tpu_custom_call.1} parent=1 // pred_check
      _
    $region39: #{tpu_custom_call.1} parent=1 // pred_check_branch
      %1510 = sbr.rel (0) target = $region41
    $region40: #{tpu_custom_call.1} parent=1 // pred_region
      %1512 = dma.done [#allocation9], 16
    $region41: #{tpu_custom_call.1} parent=1 // pred_fallthru
      _
    // Predicated region
    $region42: #{tpu_custom_call.1} parent=1 // pred_check
      _
    $region43: #{tpu_custom_call.1} parent=1 // pred_check_branch
      %1514 = sbr.rel (0) target = $region45
    $region44: #{tpu_custom_call.1} parent=1 // pred_region
      %1516 = dma.done [#allocation9], 16
    $region45: #{tpu_custom_call.1} parent=1 // pred_fallthru
      _
    %1517 = vsyncpa [#allocation3], 1
    %1518 = vsyncpa [#allocation6], 1
    %1519 = vsyncpa [#allocation4], 1
    %1520 = vsyncpa [#allocation9], 1

</llo_original>
